<compile_context>
chip_gen: v7x
topology: tpu7x:2x2x1
jax: 0.10.0
libtpu: 0.0.40
codegen_flags: <defaults>
</compile_context>

<pallas_src>
import numpy as np
import jax
import jax.numpy as jnp
from jax import lax
from jax.experimental import pallas as pl
from jax.experimental.pallas import tpu as pltpu


def _round_up(x, m):
    return ((x + m - 1) // m) * m


def _banded_conv3x3(a_f32, mask, bw_ref):
    """3x3 / stride-1 / pad-1 conv as ONE K-folded bf16 matmul.

    a_f32 : (L, WCp_in) activations (halo rows present, zeroed here via mask).
    mask  : (L, 1) 1.0 on real rows, 0.0 on halo rows.
    bw_ref: (3*WCp_in, WCp_out) banded weights, K ordered [dy=-1 | dy=0 | dy=+1];
            horizontal taps + horizontal zero padding folded into each WCp_in block.
    """
    L = a_f32.shape[0]
    am = a_f32 * mask                                            # zero halo rows
    a_c = am.astype(jnp.bfloat16)
    a_up = pltpu.roll(am, 1, axis=0).astype(jnp.bfloat16)        # row i <- a[i-1]
    a_dn = pltpu.roll(am, L - 1, axis=0).astype(jnp.bfloat16)    # row i <- a[i+1]
    a_cat = jnp.concatenate([a_up, a_c, a_dn], axis=1)           # (L, 3*WCp_in)
    return jnp.dot(a_cat, bw_ref[...], preferred_element_type=jnp.float32)


def _preact_block_kernel(x_ref, mask_ref, s1_ref, b1_ref, bw1_ref,
                         s2_ref, b2_ref, bw2_ref, pool_ref, rows_ref,
                         g1_ref, f1b_ref, f2w_ref, f2b_ref, out_ref):
    mask = mask_ref[...]                                         # (L_blk, 1)

    # --- BN1 (folded eval-mode) + ReLU, then conv1 (one banded matmul) ---
    a1 = jnp.maximum(x_ref[...] * s1_ref[...] + b1_ref[...], 0.0)
    h1 = _banded_conv3x3(a1, mask, bw1_ref)                      # (L_blk, WCmid_p) f32

    # --- BN2 + ReLU, then conv2 ---
    a2 = jnp.maximum(h1 * s2_ref[...] + b2_ref[...], 0.0)
    h2 = _banded_conv3x3(a2, mask, bw2_ref)                      # (L_blk, WCmid_p) f32

    # --- squeeze-excite: pool -> fc1 -> relu -> fc2 -> sigmoid.  The W-broadcast
    #     matrices (gsum / tile) are folded into g1 / f2w / f2b on the host. ---
    pooled = jnp.dot(pool_ref[...], h2.astype(jnp.bfloat16),
                     preferred_element_type=jnp.float32)         # (NB, WCmid_p)
    se = jnp.maximum(
        jnp.dot(pooled.astype(jnp.bfloat16), g1_ref[...],
                preferred_element_type=jnp.float32) + f1b_ref[...], 0.0)   # (NB, Cq)
    gate = jax.nn.sigmoid(
        jnp.dot(se.astype(jnp.bfloat16), f2w_ref[...],
                preferred_element_type=jnp.float32) + f2b_ref[...])        # (NB, WCmid_p)

    if rows_ref.shape[1] == 1:          # single image per block: plain VPU broadcast
        gate_rows = gate
    else:                               # per-image row broadcast via tiny matmul
        gate_rows = jnp.dot(rows_ref[...], gate.astype(jnp.bfloat16),
                            preferred_element_type=jnp.float32)
    out_ref[...] = (h2 * gate_rows).astype(out_ref.dtype)


def preact_block(x_nchw, params):
    N, Cin, H, W = x_nchw.shape
    w1 = params["w1"]                                   # torch OIHW (Cmid, Cin, 3, 3)
    Cmid = w1.shape[0]
    Cq = params["fc1_w"].shape[0]

    Hp = _round_up(H + 2, 8)                            # rows/image incl. zero halo
    WCin, WCmid = W * Cin, W * Cmid
    WCin_p = _round_up(WCin, 128)                       # lane-dense (padded) widths
    WCmid_p = _round_up(WCmid, 128)
    L = N * Hp

    # TODO(synk): at large W*C the banded weights (3*(W*C)^2 bf16 per conv) blow VMEM
    # (esp. v7x 64 MiB); tile W or fall back to per-tap small-K matmuls in that regime.

    # ---- fold eval-mode BatchNorm; tile per-channel vectors across W, pad lanes ----
    def fold_bn(bn, eps=1e-5):
        gamma, beta, mean, var = bn
        scale = gamma / jnp.sqrt(var + eps)
        return scale, beta - mean * scale

    def tile_pad(v, wc_p):
        t = jnp.tile(v, W)
        return jnp.pad(t, (0, wc_p - t.shape[0])).reshape(1, wc_p)

    s1, b1 = fold_bn(params["bn1"])
    s2, b2 = fold_bn(params["bn2"])
    s1t, b1t = tile_pad(s1, WCin_p), tile_pad(b1, WCin_p)
    s2t, b2t = tile_pad(s2, WCmid_p), tile_pad(b2, WCmid_p)

    # ---- banded conv weights, vertical taps folded into K: (3*WCp_in, WCp_out) ----
    band = np.zeros((3, W, W), np.float32)              # band[kx, w_in, w_out]
    for kx in range(3):
        for c in range(W):
            cp = c + kx - 1
            if 0 <= cp < W:
                band[kx, cp, c] = 1.0
    band = jnp.asarray(band)

    def banded(w, wc_in_p, wc_out_p):                   # w: (Cout, Cin, 3, 3)
        co, ci = w.shape[0], w.shape[1]
        bw = jnp.einsum("xpc,oiyx->ypico", band, w).reshape(3, W * ci, W * co)
        bw = jnp.pad(bw, ((0, 0), (0, wc_in_p - W * ci), (0, wc_out_p - W * co)))
        return bw.reshape(3 * wc_in_p, wc_out_p).astype(jnp.bfloat16)

    bw1 = banded(w1, WCin_p, WCmid_p)
    bw2 = banded(params["w2"], WCmid_p, WCmid_p)

    # ---- squeeze-excite weights with the W-broadcast matrices folded in (exact) ----
    gsum = np.zeros((WCmid_p, Cmid), np.float32)        # sum over W per channel
    tilm = np.zeros((Cmid, WCmid_p), np.float32)        # replicate channel across W
    for w_ in range(W):
        for c in range(Cmid):
            gsum[w_ * Cmid + c, c] = 1.0
            tilm[c, w_ * Cmid + c] = 1.0
    gsum, tilm = jnp.asarray(gsum), jnp.asarray(tilm)

    f1w = params["fc1_w"].reshape(Cq, Cmid).T           # (Cmid, Cq)
    f2w = params["fc2_w"].reshape(Cmid, Cq).T           # (Cq, Cmid)
    g1 = (gsum @ f1w).astype(jnp.bfloat16)              # (WCmid_p, Cq)
    f1b = params["fc1_b"].reshape(1, Cq).astype(jnp.float32)
    f2w_t = (f2w @ tilm).astype(jnp.bfloat16)           # (Cq, WCmid_p)
    f2b_t = params["fc2_b"].reshape(1, Cmid) @ tilm     # (1, WCmid_p) f32

    # ---- batch grid: NB images / step, >=2 steps when possible (v7x megacore) ----
    weight_bytes = 2 * (bw1.size + bw2.size) * 2        # bf16, x2 pipeline buffering
    row_bytes = 20 * WCin_p + 28 * WCmid_p              # rough live planes per row
    budget = 12 * 1024 * 1024 - weight_bytes
    NB = 1
    for d in range(1, N + 1):
        if N % d:
            continue
        if N >= 2 and N // d < 2:
            continue                                    # keep >=2 grid steps
        if d * Hp > 512 or d * Hp * row_bytes > budget:
            continue
        NB = d
    G = N // NB
    L_blk = NB * Hp

    # ---- per-block constant pooling / broadcast / mask matrices ----
    rowmask = np.zeros((L_blk, 1), np.float32)
    pool = np.zeros((NB, L_blk), np.float32)
    rows = np.zeros((L_blk, NB), np.float32)
    for n in range(NB):
        rows[n * Hp:(n + 1) * Hp, n] = 1.0
        rowmask[n * Hp + 1: n * Hp + 1 + H, 0] = 1.0
        pool[n, n * Hp + 1: n * Hp + 1 + H] = 1.0 / (H * W)
    rowmask = jnp.asarray(rowmask)
    pool = jnp.asarray(pool).astype(jnp.bfloat16)
    rows = jnp.asarray(rows).astype(jnp.bfloat16)

    # ---- NCHW -> vertically zero-padded, lane-padded row plane (N*Hp, WCin_p) ----
    x_rows = jnp.transpose(x_nchw, (0, 2, 3, 1)).reshape(N, H, WCin)
    x_rows = jnp.pad(x_rows, ((0, 0), (1, Hp - H - 1), (0, WCin_p - WCin)))
    x_rows = x_rows.reshape(L, WCin_p)

    def const(shape):
        return pl.BlockSpec(shape, lambda g: (0,) * len(shape))

    flops = 2 * L * (3 * WCin_p) * WCmid_p + 2 * L * (3 * WCmid_p) * WCmid_p
    bytes_accessed = (L * WCin_p * 4 + L * WCmid_p * 4 + (bw1.size + bw2.size) * 2)
    cost = pl.CostEstimate(flops=int(flops), transcendentals=int(N * WCmid_p),
                           bytes_accessed=int(bytes_accessed))

    vmem_need = 2 * L_blk * row_bytes + weight_bytes + (1 << 20)
    vmem_limit = int(min(64 * 1024 * 1024, max(16 * 1024 * 1024, vmem_need)))

    out_pad = pl.pallas_call(
        _preact_block_kernel,
        out_shape=jax.ShapeDtypeStruct((L, WCmid_p), jnp.float32),
        grid_spec=pltpu.PrefetchScalarGridSpec(
            num_scalar_prefetch=0,
            grid=(G,),
            in_specs=[
                pl.BlockSpec((L_blk, WCin_p), lambda g: (g, 0)),      # x row plane
                const((L_blk, 1)),                                    # real-row mask
                const((1, WCin_p)), const((1, WCin_p)),               # bn1 scale/bias
                const((3 * WCin_p, WCmid_p)),                         # conv1 banded W
                const((1, WCmid_p)), const((1, WCmid_p)),             # bn2 scale/bias
                const((3 * WCmid_p, WCmid_p)),                        # conv2 banded W
                const((NB, L_blk)),                                   # pooling matrix
                const((L_blk, NB)),                                   # row broadcast
                const((WCmid_p, Cq)), const((1, Cq)),                 # fc1 (gsum folded)
                const((Cq, WCmid_p)), const((1, WCmid_p)),            # fc2 (tile folded)
            ],
            out_specs=pl.BlockSpec((L_blk, WCmid_p), lambda g: (g, 0)),
        ),
        compiler_params=pltpu.CompilerParams(
            dimension_semantics=("parallel",),
            vmem_limit_bytes=vmem_limit),
        cost_estimate=cost,
    )(x_rows, rowmask, s1t, b1t, bw1, s2t, b2t, bw2,
      pool, rows, g1, f1b, f2w_t, f2b_t)

    out = out_pad[:, :WCmid].reshape(N, Hp, W, Cmid)[:, 1:H + 1]
    return jnp.transpose(out, (0, 3, 1, 2))


# ------------------------- deterministic parameters -------------------------

def init_params(key, in_planes, planes):
    ks = jax.random.split(key, 8)

    def bn_params(k, c):
        k1, k2, k3, k4 = jax.random.split(k, 4)
        gamma = 1.0 + 0.1 * jax.random.normal(k1, (c,), jnp.float32)
        beta = 0.1 * jax.random.normal(k2, (c,), jnp.float32)
        mean = 0.1 * jax.random.normal(k3, (c,), jnp.float32)
        var = 1.0 + 0.5 * jax.random.uniform(k4, (c,), jnp.float32)
        return (gamma, beta, mean, var)

    return {
        "bn1": bn_params(ks[0], in_planes),
        "w1": 0.2 * jax.random.normal(ks[1], (planes, in_planes, 3, 3), jnp.float32),
        "bn2": bn_params(ks[2], planes),
        "w2": 0.2 * jax.random.normal(ks[3], (planes, planes, 3, 3), jnp.float32),
        "fc1_w": 0.2 * jax.random.normal(ks[4], (planes // 4, planes, 1, 1), jnp.float32),
        "fc1_b": 0.1 * jax.random.normal(ks[5], (planes // 4,), jnp.float32),
        "fc2_w": 0.2 * jax.random.normal(ks[6], (planes, planes // 4, 1, 1), jnp.float32),
        "fc2_b": 0.1 * jax.random.normal(ks[7], (planes,), jnp.float32),
    }


# ----------------------------- pure-JAX reference ----------------------------

def ref_forward(x, p):
    def bn(y, prm, eps=1e-5):
        gamma, beta, mean, var = prm
        inv = gamma / jnp.sqrt(var + eps)
        return ((y - mean[None, :, None, None]) * inv[None, :, None, None]
                + beta[None, :, None, None])

    dn = ("NCHW", "OIHW", "NCHW")
    out = jax.nn.relu(bn(x, p["bn1"]))
    # `shortcut` in the torch module is computed but never used in the output.
    out = lax.conv_general_dilated(out, p["w1"], (1, 1), ((1, 1), (1, 1)),
                                   dimension_numbers=dn)
    out = lax.conv_general_dilated(jax.nn.relu(bn(out, p["bn2"])), p["w2"],
                                   (1, 1), ((1, 1), (1, 1)),
                                   dimension_numbers=dn)
    w = jnp.mean(out, axis=(2, 3), keepdims=True)
    w = jax.nn.relu(
        lax.conv_general_dilated(w, p["fc1_w"], (1, 1), "VALID",
                                 dimension_numbers=dn)
        + p["fc1_b"][None, :, None, None])
    w = jax.nn.sigmoid(
        lax.conv_general_dilated(w, p["fc2_w"], (1, 1), "VALID",
                                 dimension_numbers=dn)
        + p["fc2_b"][None, :, None, None])
    return out * w


if __name__ == "__main__":
    key = jax.random.PRNGKey(0)
    kx, kp = jax.random.split(key)

    N, in_planes, H, W = 2, 4, 16, 16
    planes = 8  # stride = 1 (module default)

    x = jax.random.normal(kx, (N, in_planes, H, W), jnp.float32)
    params = init_params(kp, in_planes, planes)

    out = preact_block(x, params)
    out = jax.block_until_ready(out)

    assert out.shape == (N, planes, H, W)
    ref = ref_forward(x, params)
    np.testing.assert_allclose(np.asarray(out), np.asarray(ref),
                               rtol=2e-2, atol=2e-2)
    print("KERNEL_OK")
</pallas_src>

<mosaic_0001>
module attributes {stable_mosaic.version = 11 : i64} {
  func.func @_preact_block_kernel(%arg0: i32, %arg1: memref<24x128xf32, #tpu.memory_space<vmem>>, %arg2: memref<24x1xf32, #tpu.memory_space<vmem>>, %arg3: memref<1x128xf32, #tpu.memory_space<vmem>>, %arg4: memref<1x128xf32, #tpu.memory_space<vmem>>, %arg5: memref<384x128xbf16, #tpu.memory_space<vmem>>, %arg6: memref<1x128xf32, #tpu.memory_space<vmem>>, %arg7: memref<1x128xf32, #tpu.memory_space<vmem>>, %arg8: memref<384x128xbf16, #tpu.memory_space<vmem>>, %arg9: memref<1x24xbf16, #tpu.memory_space<vmem>>, %arg10: memref<24x1xbf16, #tpu.memory_space<vmem>>, %arg11: memref<128x2xbf16, #tpu.memory_space<vmem>>, %arg12: memref<1x2xf32, #tpu.memory_space<vmem>>, %arg13: memref<2x128xbf16, #tpu.memory_space<vmem>>, %arg14: memref<1x128xf32, #tpu.memory_space<vmem>>, %arg15: memref<24x128xf32, #tpu.memory_space<vmem>>) attributes {dimension_semantics = [#tpu.dimension_semantics<parallel>], iteration_bounds = array<i64: 2>, scalar_prefetch = 0 : i64, scratch_operands = 0 : i64, tpu.core_type = #tpu.core_type<tc>, window_params = [{transform_indices = @transform_0, window_bounds = array<i64: 24, 128>}, {pipeline_mode = #tpu.pipeline_mode<synchronous>, transform_indices = @transform_1, window_bounds = array<i64: 24, 1>}, {pipeline_mode = #tpu.pipeline_mode<synchronous>, transform_indices = @transform_2, window_bounds = array<i64: 1, 128>}, {pipeline_mode = #tpu.pipeline_mode<synchronous>, transform_indices = @transform_3, window_bounds = array<i64: 1, 128>}, {pipeline_mode = #tpu.pipeline_mode<synchronous>, transform_indices = @transform_4, window_bounds = array<i64: 384, 128>}, {pipeline_mode = #tpu.pipeline_mode<synchronous>, transform_indices = @transform_5, window_bounds = array<i64: 1, 128>}, {pipeline_mode = #tpu.pipeline_mode<synchronous>, transform_indices = @transform_6, window_bounds = array<i64: 1, 128>}, {pipeline_mode = #tpu.pipeline_mode<synchronous>, transform_indices = @transform_7, window_bounds = array<i64: 384, 128>}, {pipeline_mode = #tpu.pipeline_mode<synchronous>, transform_indices = @transform_8, window_bounds = array<i64: 1, 24>}, {pipeline_mode = #tpu.pipeline_mode<synchronous>, transform_indices = @transform_9, window_bounds = array<i64: 24, 1>}, {pipeline_mode = #tpu.pipeline_mode<synchronous>, transform_indices = @transform_10, window_bounds = array<i64: 128, 2>}, {pipeline_mode = #tpu.pipeline_mode<synchronous>, transform_indices = @transform_11, window_bounds = array<i64: 1, 2>}, {pipeline_mode = #tpu.pipeline_mode<synchronous>, transform_indices = @transform_12, window_bounds = array<i64: 2, 128>}, {pipeline_mode = #tpu.pipeline_mode<synchronous>, transform_indices = @transform_13, window_bounds = array<i64: 1, 128>}, {transform_indices = @transform_14, window_bounds = array<i64: 24, 128>}]} {
    %c0 = arith.constant 0 : index
    %c0_0 = arith.constant 0 : index
    %0 = vector.load %arg2[%c0, %c0_0] : memref<24x1xf32, #tpu.memory_space<vmem>>, vector<24x1xf32>
    %c0_1 = arith.constant 0 : index
    %c0_2 = arith.constant 0 : index
    %1 = vector.load %arg1[%c0_1, %c0_2] : memref<24x128xf32, #tpu.memory_space<vmem>>, vector<24x128xf32>
    %c0_3 = arith.constant 0 : index
    %c0_4 = arith.constant 0 : index
    %2 = vector.load %arg3[%c0_3, %c0_4] : memref<1x128xf32, #tpu.memory_space<vmem>>, vector<1x128xf32>
    %3 = vector.broadcast %2 : vector<1x128xf32> to vector<24x128xf32>
    %4 = arith.mulf %1, %3 : vector<24x128xf32>
    %c0_5 = arith.constant 0 : index
    %c0_6 = arith.constant 0 : index
    %5 = vector.load %arg4[%c0_5, %c0_6] : memref<1x128xf32, #tpu.memory_space<vmem>>, vector<1x128xf32>
    %6 = vector.broadcast %5 : vector<1x128xf32> to vector<24x128xf32>
    %7 = arith.addf %4, %6 : vector<24x128xf32>
    %cst = arith.constant 0.000000e+00 : f32
    %8 = vector.broadcast %cst : f32 to vector<24x128xf32>
    %9 = arith.maximumf %7, %8 : vector<24x128xf32>
    %10 = vector.broadcast %0 : vector<24x1xf32> to vector<24x128xf32>
    %11 = arith.mulf %9, %10 : vector<24x128xf32>
    %12 = arith.truncf %11 : vector<24x128xf32> to vector<24x128xbf16>
    %c1_i32 = arith.constant 1 : i32
    %13 = tpu.dynamic_rotate %11 by %c1_i32 dim 0 : vector<24x128xf32>, i32 -> vector<24x128xf32>
    %14 = arith.truncf %13 : vector<24x128xf32> to vector<24x128xbf16>
    %c23_i32 = arith.constant 23 : i32
    %15 = tpu.dynamic_rotate %11 by %c23_i32 dim 0 : vector<24x128xf32>, i32 -> vector<24x128xf32>
    %16 = arith.truncf %15 : vector<24x128xf32> to vector<24x128xbf16>
    %17 = tpu.concatenate %14, %12, %16 in 1 : vector<24x128xbf16>, vector<24x128xbf16>, vector<24x128xbf16> -> vector<24x384xbf16>
    %c0_7 = arith.constant 0 : index
    %c0_8 = arith.constant 0 : index
    %18 = vector.load %arg5[%c0_7, %c0_8] : memref<384x128xbf16, #tpu.memory_space<vmem>>, vector<384x128xbf16>
    %cst_9 = arith.constant dense<0.000000e+00> : vector<24x128xf32>
    %19 = tpu.matmul %17, %18, %cst_9 {dimension_numbers = #tpu.dot_dimension_numbers<[1], [0], [0], [1], [0, 0, 1, 1], [], []>} : vector<24x384xbf16>, vector<384x128xbf16>, vector<24x128xf32> -> vector<24x128xf32>
    %c0_10 = arith.constant 0 : index
    %c0_11 = arith.constant 0 : index
    %20 = vector.load %arg6[%c0_10, %c0_11] : memref<1x128xf32, #tpu.memory_space<vmem>>, vector<1x128xf32>
    %21 = vector.broadcast %20 : vector<1x128xf32> to vector<24x128xf32>
    %22 = arith.mulf %19, %21 : vector<24x128xf32>
    %c0_12 = arith.constant 0 : index
    %c0_13 = arith.constant 0 : index
    %23 = vector.load %arg7[%c0_12, %c0_13] : memref<1x128xf32, #tpu.memory_space<vmem>>, vector<1x128xf32>
    %24 = vector.broadcast %23 : vector<1x128xf32> to vector<24x128xf32>
    %25 = arith.addf %22, %24 : vector<24x128xf32>
    %cst_14 = arith.constant 0.000000e+00 : f32
    %26 = vector.broadcast %cst_14 : f32 to vector<24x128xf32>
    %27 = arith.maximumf %25, %26 : vector<24x128xf32>
    %28 = vector.broadcast %0 : vector<24x1xf32> to vector<24x128xf32>
    %29 = arith.mulf %27, %28 : vector<24x128xf32>
    %30 = arith.truncf %29 : vector<24x128xf32> to vector<24x128xbf16>
    %c1_i32_15 = arith.constant 1 : i32
    %31 = tpu.dynamic_rotate %29 by %c1_i32_15 dim 0 : vector<24x128xf32>, i32 -> vector<24x128xf32>
    %32 = arith.truncf %31 : vector<24x128xf32> to vector<24x128xbf16>
    %c23_i32_16 = arith.constant 23 : i32
    %33 = tpu.dynamic_rotate %29 by %c23_i32_16 dim 0 : vector<24x128xf32>, i32 -> vector<24x128xf32>
    %34 = arith.truncf %33 : vector<24x128xf32> to vector<24x128xbf16>
    %35 = tpu.concatenate %32, %30, %34 in 1 : vector<24x128xbf16>, vector<24x128xbf16>, vector<24x128xbf16> -> vector<24x384xbf16>
    %c0_17 = arith.constant 0 : index
    %c0_18 = arith.constant 0 : index
    %36 = vector.load %arg8[%c0_17, %c0_18] : memref<384x128xbf16, #tpu.memory_space<vmem>>, vector<384x128xbf16>
    %cst_19 = arith.constant dense<0.000000e+00> : vector<24x128xf32>
    %37 = tpu.matmul %35, %36, %cst_19 {dimension_numbers = #tpu.dot_dimension_numbers<[1], [0], [0], [1], [0, 0, 1, 1], [], []>} : vector<24x384xbf16>, vector<384x128xbf16>, vector<24x128xf32> -> vector<24x128xf32>
    %c0_20 = arith.constant 0 : index
    %c0_21 = arith.constant 0 : index
    %38 = vector.load %arg9[%c0_20, %c0_21] : memref<1x24xbf16, #tpu.memory_space<vmem>>, vector<1x24xbf16>
    %39 = arith.truncf %37 : vector<24x128xf32> to vector<24x128xbf16>
    %cst_22 = arith.constant dense<0.000000e+00> : vector<1x128xf32>
    %40 = tpu.matmul %38, %39, %cst_22 {dimension_numbers = #tpu.dot_dimension_numbers<[1], [0], [0], [1], [0, 0, 1, 1], [], []>} : vector<1x24xbf16>, vector<24x128xbf16>, vector<1x128xf32> -> vector<1x128xf32>
    %41 = arith.truncf %40 : vector<1x128xf32> to vector<1x128xbf16>
    %c0_23 = arith.constant 0 : index
    %c0_24 = arith.constant 0 : index
    %42 = vector.load %arg11[%c0_23, %c0_24] : memref<128x2xbf16, #tpu.memory_space<vmem>>, vector<128x2xbf16>
    %cst_25 = arith.constant dense<0.000000e+00> : vector<1x2xf32>
    %43 = tpu.matmul %41, %42, %cst_25 {dimension_numbers = #tpu.dot_dimension_numbers<[1], [0], [0], [1], [0, 0, 1, 1], [], []>} : vector<1x128xbf16>, vector<128x2xbf16>, vector<1x2xf32> -> vector<1x2xf32>
    %c0_26 = arith.constant 0 : index
    %c0_27 = arith.constant 0 : index
    %44 = vector.load %arg12[%c0_26, %c0_27] : memref<1x2xf32, #tpu.memory_space<vmem>>, vector<1x2xf32>
    %45 = arith.addf %43, %44 : vector<1x2xf32>
    %cst_28 = arith.constant 0.000000e+00 : f32
    %46 = vector.broadcast %cst_28 : f32 to vector<1x2xf32>
    %47 = arith.maximumf %45, %46 : vector<1x2xf32>
    %48 = arith.truncf %47 : vector<1x2xf32> to vector<1x2xbf16>
    %c0_29 = arith.constant 0 : index
    %c0_30 = arith.constant 0 : index
    %49 = vector.load %arg13[%c0_29, %c0_30] : memref<2x128xbf16, #tpu.memory_space<vmem>>, vector<2x128xbf16>
    %cst_31 = arith.constant dense<0.000000e+00> : vector<1x128xf32>
    %50 = tpu.matmul %48, %49, %cst_31 {dimension_numbers = #tpu.dot_dimension_numbers<[1], [0], [0], [1], [0, 0, 1, 1], [], []>} : vector<1x2xbf16>, vector<2x128xbf16>, vector<1x128xf32> -> vector<1x128xf32>
    %c0_32 = arith.constant 0 : index
    %c0_33 = arith.constant 0 : index
    %51 = vector.load %arg14[%c0_32, %c0_33] : memref<1x128xf32, #tpu.memory_space<vmem>>, vector<1x128xf32>
    %52 = arith.addf %50, %51 : vector<1x128xf32>
    %53 = arith.negf %52 : vector<1x128xf32>
    %54 = math.exp %53 : vector<1x128xf32>
    %cst_34 = arith.constant 1.000000e+00 : f32
    %55 = vector.broadcast %cst_34 : f32 to vector<1x128xf32>
    %56 = arith.addf %55, %54 : vector<1x128xf32>
    %57 = arith.divf %55, %56 : vector<1x128xf32>
    %58 = vector.broadcast %57 : vector<1x128xf32> to vector<24x128xf32>
    %59 = arith.mulf %37, %58 : vector<24x128xf32>
    %c0_35 = arith.constant 0 : index
    %c0_36 = arith.constant 0 : index
    %60 = vector.load %arg15[%c0_35, %c0_36] : memref<24x128xf32, #tpu.memory_space<vmem>>, vector<24x128xf32>
    tpu.vector_store %arg15[%c0_35, %c0_36], %59 {strides = array<i32>} : memref<24x128xf32, #tpu.memory_space<vmem>>, vector<24x128xf32>,
    return
  }
  func.func @transform_0(%arg0: i32) -> (i32, i32) {
    %c0_i32 = arith.constant 0 : i32
    %c0_i32_0 = arith.constant 0 : i32
    return %arg0, %c0_i32 : i32, i32
  }
  func.func @transform_1(%arg0: i32) -> (i32, i32) {
    %c0_i32 = arith.constant 0 : i32
    %c0_i32_0 = arith.constant 0 : i32
    %c0_i32_1 = arith.constant 0 : i32
    return %c0_i32, %c0_i32_0 : i32, i32
  }
  func.func @transform_2(%arg0: i32) -> (i32, i32) {
    %c0_i32 = arith.constant 0 : i32
    %c0_i32_0 = arith.constant 0 : i32
    %c0_i32_1 = arith.constant 0 : i32
    return %c0_i32, %c0_i32_0 : i32, i32
  }
  func.func @transform_3(%arg0: i32) -> (i32, i32) {
    %c0_i32 = arith.constant 0 : i32
    %c0_i32_0 = arith.constant 0 : i32
    %c0_i32_1 = arith.constant 0 : i32
    return %c0_i32, %c0_i32_0 : i32, i32
  }
  func.func @transform_4(%arg0: i32) -> (i32, i32) {
    %c0_i32 = arith.constant 0 : i32
    %c0_i32_0 = arith.constant 0 : i32
    %c0_i32_1 = arith.constant 0 : i32
    return %c0_i32, %c0_i32_0 : i32, i32
  }
  func.func @transform_5(%arg0: i32) -> (i32, i32) {
    %c0_i32 = arith.constant 0 : i32
    %c0_i32_0 = arith.constant 0 : i32
    %c0_i32_1 = arith.constant 0 : i32
    return %c0_i32, %c0_i32_0 : i32, i32
  }
  func.func @transform_6(%arg0: i32) -> (i32, i32) {
    %c0_i32 = arith.constant 0 : i32
    %c0_i32_0 = arith.constant 0 : i32
    %c0_i32_1 = arith.constant 0 : i32
    return %c0_i32, %c0_i32_0 : i32, i32
  }
  func.func @transform_7(%arg0: i32) -> (i32, i32) {
    %c0_i32 = arith.constant 0 : i32
    %c0_i32_0 = arith.constant 0 : i32
    %c0_i32_1 = arith.constant 0 : i32
    return %c0_i32, %c0_i32_0 : i32, i32
  }
  func.func @transform_8(%arg0: i32) -> (i32, i32) {
    %c0_i32 = arith.constant 0 : i32
    %c0_i32_0 = arith.constant 0 : i32
    %c0_i32_1 = arith.constant 0 : i32
    return %c0_i32, %c0_i32_0 : i32, i32
  }
  func.func @transform_9(%arg0: i32) -> (i32, i32) {
    %c0_i32 = arith.constant 0 : i32
    %c0_i32_0 = arith.constant 0 : i32
    %c0_i32_1 = arith.constant 0 : i32
    return %c0_i32, %c0_i32_0 : i32, i32
  }
  func.func @transform_10(%arg0: i32) -> (i32, i32) {
    %c0_i32 = arith.constant 0 : i32
    %c0_i32_0 = arith.constant 0 : i32
    %c0_i32_1 = arith.constant 0 : i32
    return %c0_i32, %c0_i32_0 : i32, i32
  }
  func.func @transform_11(%arg0: i32) -> (i32, i32) {
    %c0_i32 = arith.constant 0 : i32
    %c0_i32_0 = arith.constant 0 : i32
    %c0_i32_1 = arith.constant 0 : i32
    return %c0_i32, %c0_i32_0 : i32, i32
  }
  func.func @transform_12(%arg0: i32) -> (i32, i32) {
    %c0_i32 = arith.constant 0 : i32
    %c0_i32_0 = arith.constant 0 : i32
    %c0_i32_1 = arith.constant 0 : i32
    return %c0_i32, %c0_i32_0 : i32, i32
  }
  func.func @transform_13(%arg0: i32) -> (i32, i32) {
    %c0_i32 = arith.constant 0 : i32
    %c0_i32_0 = arith.constant 0 : i32
    %c0_i32_1 = arith.constant 0 : i32
    return %c0_i32, %c0_i32_0 : i32, i32
  }
  func.func @transform_14(%arg0: i32) -> (i32, i32) {
    %c0_i32 = arith.constant 0 : i32
    %c0_i32_0 = arith.constant 0 : i32
    return %arg0, %c0_i32 : i32, i32
  }
}

</mosaic_0001>

<llo_original>
// kernel: tpu_custom_call.1
$region0: #{tpu_custom_call.1}
  #allocation0 [shape = 'u32[]', space=smem, size = 0x4, offset = 0x4, fixed_abs, tag = 'smem constant byte address 0x4 - core index']
  #allocation1 [shape = 'u32[144,128]{1,0:T(1,128)}', space=vmem, size = 0x12000, scoped, tag = 'internal scratch']
  %s0 = inlined_call_operand.vmem [shape: f32[48,128], index: 0, kind: input, shape index: {}]
  %s1 = inlined_call_operand.vmem [shape: f32[24,1], index: 1, kind: input, shape index: {}]
  %s2 = inlined_call_operand.vmem [shape: f32[1,128], index: 2, kind: input, shape index: {}]
  %s3 = inlined_call_operand.vmem [shape: f32[1,128], index: 3, kind: input, shape index: {}]
  %s4 = inlined_call_operand.hbm [shape: bf16[384,128], index: 4, kind: input, shape index: {}]
  %s5 = inlined_call_operand.vmem [shape: f32[1,128], index: 5, kind: input, shape index: {}]
  %s6 = inlined_call_operand.vmem [shape: f32[1,128], index: 6, kind: input, shape index: {}]
  %s7 = inlined_call_operand.hbm [shape: bf16[384,128], index: 7, kind: input, shape index: {}]
  %s8 = inlined_call_operand.vmem [shape: bf16[1,24], index: 8, kind: input, shape index: {}]
  %s9 = inlined_call_operand.vmem [shape: bf16[24,1], index: 9, kind: input, shape index: {}]
  %s10 = inlined_call_operand.vmem [shape: bf16[128,2], index: 10, kind: input, shape index: {}]
  %s11 = inlined_call_operand.vmem [shape: f32[1,2], index: 11, kind: input, shape index: {}]
  %s12 = inlined_call_operand.vmem [shape: bf16[2,128], index: 12, kind: input, shape index: {}]
  %s13 = inlined_call_operand.vmem [shape: f32[1,128], index: 13, kind: input, shape index: {}]
  %s14 = inlined_call_operand.hbm [shape: f32[48,128], index: 14, kind: output, shape index: {}]
  %s15 = sld [smem:[#allocation0]]
  $region97: #{tpu_custom_call.1} parent=0
    _
  %s17 = ssub.s32 1, %s15
  %s18 = scalar_select 0, %s17, %s15
  $region1: #{tpu_custom_call.1} parent=0
    #allocation2 [shape = 'u8[98304]{0}', space=vmem, size = 0x18000, scoped, tag = 'input window, operand 4, single buffered']
    #allocation3 [shape = 's32[2]{0}', space=sflag, size = 0x8, scoped, tag = 'scoped memory for tpu_custom_call.1']
    #allocation4 [shape = 's32[2]{0}', space=sflag, size = 0x8, scoped, tag = 'scoped memory for tpu_custom_call.1']
    #allocation5 [shape = 'u8[98304]{0}', space=vmem, size = 0x18000, scoped, tag = 'input window, operand 7, single buffered']
    #allocation6 [shape = 's32[1]{0}', space=sflag, size = 0x4, scoped, tag = 'scoped memory for tpu_custom_call.1']
    #allocation7 [shape = 'u8[24576]{0}', space=vmem, size = 0x6000, scoped, tag = 'output window, operand 0']
    %19 = vsyncpa [#allocation3], 0
    %20 = vsyncpa [#allocation6], 0
    %21 = vsyncpa [#allocation4], 0
    %s22 = scalar_lea.sflag [#allocation4], 1
    %23 = vsyncpa %s22, 0
    loop: start=0, step=1, limit=4
    $region2: #{tpu_custom_call.1} parent=1 // loop_pre_header
      _
    $region3: #{tpu_custom_call.1} parent=1 // loop_header
      %s25 = sphi 0, %s29
      %p26 = scmp.ge.s32.totalorder %s25, 4
      %s35 = sphi 0, %s37
      %s38 = sphi 0, %s35
      %s39 = sphi 0, %s38
      %s55 = sphi 0, %s39
      %s59 = sphi 0, %s59
      %s61 = sphi 0, %s59
      %s62 = sphi 0, %s61
      %s76 = sphi 0, %s62
      %s80 = sphi 0, %s80
      %s82 = sphi 0, %s80
      %s83 = sphi 0, %s82
      %s97 = sphi 0, %s83
      %s101 = sphi 0, %s101
      %s103 = sphi 0, %s101
      %s104 = sphi 0, %s103
      %s118 = sphi 0, %s104
      %s122 = sphi 0, %s122
      %s124 = sphi 0, %s122
      %s125 = sphi 0, %s124
      %s139 = sphi 0, %s125
      %s143 = sphi 0, %s143
      %s145 = sphi 0, %s143
      %s146 = sphi 0, %s145
      %s160 = sphi 0, %s146
      %s164 = sphi 0, %s164
      %s166 = sphi 0, %s164
      %s167 = sphi 0, %s166
      %s181 = sphi 0, %s167
      %s185 = sphi 0, %s185
      %s187 = sphi 0, %s185
      %s188 = sphi 0, %s187
      %s202 = sphi 0, %s188
      %s206 = sphi 0, %s206
      %s208 = sphi 0, %s206
      %s209 = sphi 0, %s208
      %s223 = sphi 0, %s209
      %s227 = sphi 0, %s227
      %s229 = sphi 0, %s227
      %s230 = sphi 0, %s229
      %s244 = sphi 0, %s230
      %s248 = sphi 0, %s248
      %s250 = sphi 0, %s248
      %s251 = sphi 0, %s250
      %s265 = sphi 0, %s251
      %s269 = sphi 0, %s269
      %s271 = sphi 0, %s269
      %s272 = sphi 0, %s271
      %s286 = sphi 0, %s272
      %s290 = sphi 0, %s290
      %s292 = sphi 0, %s290
      %s293 = sphi 0, %s292
      %s307 = sphi 0, %s293
      %s311 = sphi 0, %s311
      %s313 = sphi 0, %s311
      %s314 = sphi 0, %s313
      %s328 = sphi 0, %s314
      %s334 = sphi 0, %s336
      %s337 = sphi 0, %s334
      %s338 = sphi 0, %s337
      %s354 = sphi 0, %s338
    $region4: #{tpu_custom_call.1} parent=1 // loop_header_branch
      %28 = sbr.rel (%p26) target = $region8
    $region5: #{tpu_custom_call.1} parent=1 // loop_body
      %s30 = ssub.s32 %s25, 1
      %s31 = ssub.s32 %s25, 2
      %s32 = sadd.s32 %s25, 1
      %s33 = ssub.s32 %s25, %s32
      %p34 = scmp.eq.s32.totalorder %s33, 0
      %s36 = sadd.s32 %s35, 1
      %s37 = scalar_select %p34, %s35, %s36
      %p40 = pneg %p34
      %p41 = scmp.eq.s32.totalorder %s25, 1
      %p42 = por %p40, %p41
      %p43 = scmp.ne.s32.totalorder %s35, %s38
      %p44 = scmp.eq.s32.totalorder %s25, 0
      %p45 = por %p43, %p44
      %p46 = scmp.ne.s32.totalorder %s35, %s38
      %p47 = scmp.eq.s32.totalorder %s30, 1
      %p48 = por %p46, %p47
      %p49 = scmp.ne.s32.totalorder %s38, %s39
      %p50 = scmp.eq.s32.totalorder %s30, 0
      %p51 = por %p49, %p50
      %p52 = scmp.ne.s32.totalorder %s38, %s39
      %p53 = scmp.eq.s32.totalorder %s31, 1
      %p54 = por %p52, %p53
      %p56 = scmp.ne.s32.totalorder %s39, %s55
      %p57 = scmp.eq.s32.totalorder %s31, 0
      %p58 = por %p56, %p57
      %s60 = sadd.s32 %s59, 1
      %p63 = scmp.eq.s32.totalorder %s25, 1
      %p64 = scmp.ne.s32.totalorder %s59, %s61
      %p65 = scmp.eq.s32.totalorder %s25, 0
      %p66 = por %p64, %p65
      %p67 = scmp.ne.s32.totalorder %s59, %s61
      %p68 = scmp.eq.s32.totalorder %s30, 1
      %p69 = por %p67, %p68
      %p70 = scmp.ne.s32.totalorder %s61, %s62
      %p71 = scmp.eq.s32.totalorder %s30, 0
      %p72 = por %p70, %p71
      %p73 = scmp.ne.s32.totalorder %s61, %s62
      %p74 = scmp.eq.s32.totalorder %s31, 1
      %p75 = por %p73, %p74
      %p77 = scmp.ne.s32.totalorder %s62, %s76
      %p78 = scmp.eq.s32.totalorder %s31, 0
      %p79 = por %p77, %p78
      %s81 = sadd.s32 %s80, 1
      %p84 = scmp.eq.s32.totalorder %s25, 1
      %p85 = scmp.ne.s32.totalorder %s80, %s82
      %p86 = scmp.eq.s32.totalorder %s25, 0
      %p87 = por %p85, %p86
      %p88 = scmp.ne.s32.totalorder %s80, %s82
      %p89 = scmp.eq.s32.totalorder %s30, 1
      %p90 = por %p88, %p89
      %p91 = scmp.ne.s32.totalorder %s82, %s83
      %p92 = scmp.eq.s32.totalorder %s30, 0
      %p93 = por %p91, %p92
      %p94 = scmp.ne.s32.totalorder %s82, %s83
      %p95 = scmp.eq.s32.totalorder %s31, 1
      %p96 = por %p94, %p95
      %p98 = scmp.ne.s32.totalorder %s83, %s97
      %p99 = scmp.eq.s32.totalorder %s31, 0
      %p100 = por %p98, %p99
      %s102 = sadd.s32 %s101, 1
      %p105 = scmp.eq.s32.totalorder %s25, 1
      %p106 = scmp.ne.s32.totalorder %s101, %s103
      %p107 = scmp.eq.s32.totalorder %s25, 0
      %p108 = por %p106, %p107
      %p109 = scmp.ne.s32.totalorder %s101, %s103
      %p110 = scmp.eq.s32.totalorder %s30, 1
      %p111 = por %p109, %p110
      %p112 = scmp.ne.s32.totalorder %s103, %s104
      %p113 = scmp.eq.s32.totalorder %s30, 0
      %p114 = por %p112, %p113
      %p115 = scmp.ne.s32.totalorder %s103, %s104
      %p116 = scmp.eq.s32.totalorder %s31, 1
      %p117 = por %p115, %p116
      %p119 = scmp.ne.s32.totalorder %s104, %s118
      %p120 = scmp.eq.s32.totalorder %s31, 0
      %p121 = por %p119, %p120
      %s123 = sadd.s32 %s122, 1
      %p126 = scmp.eq.s32.totalorder %s25, 1
      %p127 = scmp.ne.s32.totalorder %s122, %s124
      %p128 = scmp.eq.s32.totalorder %s25, 0
      %p129 = por %p127, %p128
      %p130 = scmp.ne.s32.totalorder %s122, %s124
      %p131 = scmp.eq.s32.totalorder %s30, 1
      %p132 = por %p130, %p131
      %p133 = scmp.ne.s32.totalorder %s124, %s125
      %p134 = scmp.eq.s32.totalorder %s30, 0
      %p135 = por %p133, %p134
      %p136 = scmp.ne.s32.totalorder %s124, %s125
      %p137 = scmp.eq.s32.totalorder %s31, 1
      %p138 = por %p136, %p137
      %p140 = scmp.ne.s32.totalorder %s125, %s139
      %p141 = scmp.eq.s32.totalorder %s31, 0
      %p142 = por %p140, %p141
      %s144 = sadd.s32 %s143, 1
      %p147 = scmp.eq.s32.totalorder %s25, 1
      %p148 = scmp.ne.s32.totalorder %s143, %s145
      %p149 = scmp.eq.s32.totalorder %s25, 0
      %p150 = por %p148, %p149
      %p151 = scmp.ne.s32.totalorder %s143, %s145
      %p152 = scmp.eq.s32.totalorder %s30, 1
      %p153 = por %p151, %p152
      %p154 = scmp.ne.s32.totalorder %s145, %s146
      %p155 = scmp.eq.s32.totalorder %s30, 0
      %p156 = por %p154, %p155
      %p157 = scmp.ne.s32.totalorder %s145, %s146
      %p158 = scmp.eq.s32.totalorder %s31, 1
      %p159 = por %p157, %p158
      %p161 = scmp.ne.s32.totalorder %s146, %s160
      %p162 = scmp.eq.s32.totalorder %s31, 0
      %p163 = por %p161, %p162
      %s165 = sadd.s32 %s164, 1
      %p168 = scmp.eq.s32.totalorder %s25, 1
      %p169 = scmp.ne.s32.totalorder %s164, %s166
      %p170 = scmp.eq.s32.totalorder %s25, 0
      %p171 = por %p169, %p170
      %p172 = scmp.ne.s32.totalorder %s164, %s166
      %p173 = scmp.eq.s32.totalorder %s30, 1
      %p174 = por %p172, %p173
      %p175 = scmp.ne.s32.totalorder %s166, %s167
      %p176 = scmp.eq.s32.totalorder %s30, 0
      %p177 = por %p175, %p176
      %p178 = scmp.ne.s32.totalorder %s166, %s167
      %p179 = scmp.eq.s32.totalorder %s31, 1
      %p180 = por %p178, %p179
      %p182 = scmp.ne.s32.totalorder %s167, %s181
      %p183 = scmp.eq.s32.totalorder %s31, 0
      %p184 = por %p182, %p183
      %s186 = sadd.s32 %s185, 1
      %p189 = scmp.eq.s32.totalorder %s25, 1
      %p190 = scmp.ne.s32.totalorder %s185, %s187
      %p191 = scmp.eq.s32.totalorder %s25, 0
      %p192 = por %p190, %p191
      %p193 = scmp.ne.s32.totalorder %s185, %s187
      %p194 = scmp.eq.s32.totalorder %s30, 1
      %p195 = por %p193, %p194
      %p196 = scmp.ne.s32.totalorder %s187, %s188
      %p197 = scmp.eq.s32.totalorder %s30, 0
      %p198 = por %p196, %p197
      %p199 = scmp.ne.s32.totalorder %s187, %s188
      %p200 = scmp.eq.s32.totalorder %s31, 1
      %p201 = por %p199, %p200
      %p203 = scmp.ne.s32.totalorder %s188, %s202
      %p204 = scmp.eq.s32.totalorder %s31, 0
      %p205 = por %p203, %p204
      %s207 = sadd.s32 %s206, 1
      %p210 = scmp.eq.s32.totalorder %s25, 1
      %p211 = scmp.ne.s32.totalorder %s206, %s208
      %p212 = scmp.eq.s32.totalorder %s25, 0
      %p213 = por %p211, %p212
      %p214 = scmp.ne.s32.totalorder %s206, %s208
      %p215 = scmp.eq.s32.totalorder %s30, 1
      %p216 = por %p214, %p215
      %p217 = scmp.ne.s32.totalorder %s208, %s209
      %p218 = scmp.eq.s32.totalorder %s30, 0
      %p219 = por %p217, %p218
      %p220 = scmp.ne.s32.totalorder %s208, %s209
      %p221 = scmp.eq.s32.totalorder %s31, 1
      %p222 = por %p220, %p221
      %p224 = scmp.ne.s32.totalorder %s209, %s223
      %p225 = scmp.eq.s32.totalorder %s31, 0
      %p226 = por %p224, %p225
      %s228 = sadd.s32 %s227, 1
      %p231 = scmp.eq.s32.totalorder %s25, 1
      %p232 = scmp.ne.s32.totalorder %s227, %s229
      %p233 = scmp.eq.s32.totalorder %s25, 0
      %p234 = por %p232, %p233
      %p235 = scmp.ne.s32.totalorder %s227, %s229
      %p236 = scmp.eq.s32.totalorder %s30, 1
      %p237 = por %p235, %p236
      %p238 = scmp.ne.s32.totalorder %s229, %s230
      %p239 = scmp.eq.s32.totalorder %s30, 0
      %p240 = por %p238, %p239
      %p241 = scmp.ne.s32.totalorder %s229, %s230
      %p242 = scmp.eq.s32.totalorder %s31, 1
      %p243 = por %p241, %p242
      %p245 = scmp.ne.s32.totalorder %s230, %s244
      %p246 = scmp.eq.s32.totalorder %s31, 0
      %p247 = por %p245, %p246
      %s249 = sadd.s32 %s248, 1
      %p252 = scmp.eq.s32.totalorder %s25, 1
      %p253 = scmp.ne.s32.totalorder %s248, %s250
      %p254 = scmp.eq.s32.totalorder %s25, 0
      %p255 = por %p253, %p254
      %p256 = scmp.ne.s32.totalorder %s248, %s250
      %p257 = scmp.eq.s32.totalorder %s30, 1
      %p258 = por %p256, %p257
      %p259 = scmp.ne.s32.totalorder %s250, %s251
      %p260 = scmp.eq.s32.totalorder %s30, 0
      %p261 = por %p259, %p260
      %p262 = scmp.ne.s32.totalorder %s250, %s251
      %p263 = scmp.eq.s32.totalorder %s31, 1
      %p264 = por %p262, %p263
      %p266 = scmp.ne.s32.totalorder %s251, %s265
      %p267 = scmp.eq.s32.totalorder %s31, 0
      %p268 = por %p266, %p267
      %s270 = sadd.s32 %s269, 1
      %p273 = scmp.eq.s32.totalorder %s25, 1
      %p274 = scmp.ne.s32.totalorder %s269, %s271
      %p275 = scmp.eq.s32.totalorder %s25, 0
      %p276 = por %p274, %p275
      %p277 = scmp.ne.s32.totalorder %s269, %s271
      %p278 = scmp.eq.s32.totalorder %s30, 1
      %p279 = por %p277, %p278
      %p280 = scmp.ne.s32.totalorder %s271, %s272
      %p281 = scmp.eq.s32.totalorder %s30, 0
      %p282 = por %p280, %p281
      %p283 = scmp.ne.s32.totalorder %s271, %s272
      %p284 = scmp.eq.s32.totalorder %s31, 1
      %p285 = por %p283, %p284
      %p287 = scmp.ne.s32.totalorder %s272, %s286
      %p288 = scmp.eq.s32.totalorder %s31, 0
      %p289 = por %p287, %p288
      %s291 = sadd.s32 %s290, 1
      %p294 = scmp.eq.s32.totalorder %s25, 1
      %p295 = scmp.ne.s32.totalorder %s290, %s292
      %p296 = scmp.eq.s32.totalorder %s25, 0
      %p297 = por %p295, %p296
      %p298 = scmp.ne.s32.totalorder %s290, %s292
      %p299 = scmp.eq.s32.totalorder %s30, 1
      %p300 = por %p298, %p299
      %p301 = scmp.ne.s32.totalorder %s292, %s293
      %p302 = scmp.eq.s32.totalorder %s30, 0
      %p303 = por %p301, %p302
      %p304 = scmp.ne.s32.totalorder %s292, %s293
      %p305 = scmp.eq.s32.totalorder %s31, 1
      %p306 = por %p304, %p305
      %p308 = scmp.ne.s32.totalorder %s293, %s307
      %p309 = scmp.eq.s32.totalorder %s31, 0
      %p310 = por %p308, %p309
      %s312 = sadd.s32 %s311, 1
      %p315 = scmp.eq.s32.totalorder %s25, 1
      %p316 = scmp.ne.s32.totalorder %s311, %s313
      %p317 = scmp.eq.s32.totalorder %s25, 0
      %p318 = por %p316, %p317
      %p319 = scmp.ne.s32.totalorder %s311, %s313
      %p320 = scmp.eq.s32.totalorder %s30, 1
      %p321 = por %p319, %p320
      %p322 = scmp.ne.s32.totalorder %s313, %s314
      %p323 = scmp.eq.s32.totalorder %s30, 0
      %p324 = por %p322, %p323
      %p325 = scmp.ne.s32.totalorder %s313, %s314
      %p326 = scmp.eq.s32.totalorder %s31, 1
      %p327 = por %p325, %p326
      %p329 = scmp.ne.s32.totalorder %s314, %s328
      %p330 = scmp.eq.s32.totalorder %s31, 0
      %p331 = por %p329, %p330
      %s332 = ssub.s32 %s25, %s32
      %p333 = scmp.eq.s32.totalorder %s332, 0
      %s335 = sadd.s32 %s334, 1
      %s336 = scalar_select %p333, %s334, %s335
      %p339 = pneg %p333
      %p340 = scmp.eq.s32.totalorder %s25, 1
      %p341 = por %p339, %p340
      %p342 = scmp.ne.s32.totalorder %s334, %s337
      %p343 = scmp.eq.s32.totalorder %s25, 0
      %p344 = por %p342, %p343
      %p345 = scmp.ne.s32.totalorder %s334, %s337
      %p346 = scmp.eq.s32.totalorder %s30, 1
      %p347 = por %p345, %p346
      %p348 = scmp.ne.s32.totalorder %s337, %s338
      %p349 = scmp.eq.s32.totalorder %s30, 0
      %p350 = por %p348, %p349
      %p351 = scmp.ne.s32.totalorder %s337, %s338
      %p352 = scmp.eq.s32.totalorder %s31, 1
      %p353 = por %p351, %p352
      %p355 = scmp.ne.s32.totalorder %s338, %s354
      %p356 = scmp.eq.s32.totalorder %s31, 0
      %p357 = por %p355, %p356
      %p358 = scmp.le.s32.totalorder 1, %s25
      %p359 = scmp.lt.s32.totalorder %s25, 3
      %p360 = pnand %p358, %p359
      %p361 = pneg %p360
      // Predicated region
      $region9: #{tpu_custom_call.1} parent=5 // pred_check
        _
      $region10: #{tpu_custom_call.1} parent=5 // pred_check_branch
        %363 = sbr.rel (%p360) target = $region12
      $region11: #{tpu_custom_call.1} parent=5 // pred_region
        %s364 = ssub.s32 %s25, 1
        // Predicated region
        $region13: #{tpu_custom_call.1} parent=11 // pred_check
          %p365 = pneg %p72
        $region14: #{tpu_custom_call.1} parent=11 // pred_check_branch
          %367 = sbr.rel (%p365) target = $region16
        $region15: #{tpu_custom_call.1} parent=11 // pred_region
          _
        $region16: #{tpu_custom_call.1} parent=11 // pred_fallthru
          _
        // Predicated region
        $region17: #{tpu_custom_call.1} parent=11 // pred_check
          %p368 = pneg %p93
        $region18: #{tpu_custom_call.1} parent=11 // pred_check_branch
          %370 = sbr.rel (%p368) target = $region20
        $region19: #{tpu_custom_call.1} parent=11 // pred_region
          _
        $region20: #{tpu_custom_call.1} parent=11 // pred_fallthru
          _
        // Predicated region
        $region21: #{tpu_custom_call.1} parent=11 // pred_check
          %p371 = pneg %p114
        $region22: #{tpu_custom_call.1} parent=11 // pred_check_branch
          %373 = sbr.rel (%p371) target = $region24
        $region23: #{tpu_custom_call.1} parent=11 // pred_region
          _
        $region24: #{tpu_custom_call.1} parent=11 // pred_fallthru
          _
        // Predicated region
        $region25: #{tpu_custom_call.1} parent=11 // pred_check
          %p374 = pneg %p135
        $region26: #{tpu_custom_call.1} parent=11 // pred_check_branch
          %376 = sbr.rel (%p374) target = $region28
        $region27: #{tpu_custom_call.1} parent=11 // pred_region
          %s378 = ssub.s32 3072, 3072
          %379 = vsyncadd [#allocation3], %s378
          %s380 = sshll.u32 [#allocation2], 4
          %s381 = int_to_ptr.vmem [resolvable:$true] %s380
          %386 = dma.hbm_to_vmem [thread:$0]  %s4, 3072, %s381, [#allocation3], 64, 64, 4
        $region28: #{tpu_custom_call.1} parent=11 // pred_fallthru
          _
        // Predicated region
        $region29: #{tpu_custom_call.1} parent=11 // pred_check
          %p387 = pneg %p156
        $region30: #{tpu_custom_call.1} parent=11 // pred_check_branch
          %389 = sbr.rel (%p387) target = $region32
        $region31: #{tpu_custom_call.1} parent=11 // pred_region
          _
        $region32: #{tpu_custom_call.1} parent=11 // pred_fallthru
          _
        // Predicated region
        $region33: #{tpu_custom_call.1} parent=11 // pred_check
          %p390 = pneg %p177
        $region34: #{tpu_custom_call.1} parent=11 // pred_check_branch
          %392 = sbr.rel (%p390) target = $region36
        $region35: #{tpu_custom_call.1} parent=11 // pred_region
          _
        $region36: #{tpu_custom_call.1} parent=11 // pred_fallthru
          _
        // Predicated region
        $region37: #{tpu_custom_call.1} parent=11 // pred_check
          %p393 = pneg %p198
        $region38: #{tpu_custom_call.1} parent=11 // pred_check_branch
          %395 = sbr.rel (%p393) target = $region40
        $region39: #{tpu_custom_call.1} parent=11 // pred_region
          %s397 = ssub.s32 3072, 3072
          %398 = vsyncadd [#allocation6], %s397
          %s399 = sshll.u32 [#allocation5], 4
          %s400 = int_to_ptr.vmem [resolvable:$true] %s399
          %405 = dma.hbm_to_vmem [thread:$0]  %s7, 3072, %s400, [#allocation6], 64, 64, 4
        $region40: #{tpu_custom_call.1} parent=11 // pred_fallthru
          _
        // Predicated region
        $region41: #{tpu_custom_call.1} parent=11 // pred_check
          %p406 = pneg %p219
        $region42: #{tpu_custom_call.1} parent=11 // pred_check_branch
          %408 = sbr.rel (%p406) target = $region44
        $region43: #{tpu_custom_call.1} parent=11 // pred_region
          _
        $region44: #{tpu_custom_call.1} parent=11 // pred_fallthru
          _
        // Predicated region
        $region45: #{tpu_custom_call.1} parent=11 // pred_check
          %p409 = pneg %p240
        $region46: #{tpu_custom_call.1} parent=11 // pred_check_branch
          %411 = sbr.rel (%p409) target = $region48
        $region47: #{tpu_custom_call.1} parent=11 // pred_region
          _
        $region48: #{tpu_custom_call.1} parent=11 // pred_fallthru
          _
        // Predicated region
        $region49: #{tpu_custom_call.1} parent=11 // pred_check
          %p412 = pneg %p261
        $region50: #{tpu_custom_call.1} parent=11 // pred_check_branch
          %414 = sbr.rel (%p412) target = $region52
        $region51: #{tpu_custom_call.1} parent=11 // pred_region
          _
        $region52: #{tpu_custom_call.1} parent=11 // pred_fallthru
          _
        // Predicated region
        $region53: #{tpu_custom_call.1} parent=11 // pred_check
          %p415 = pneg %p282
        $region54: #{tpu_custom_call.1} parent=11 // pred_check_branch
          %417 = sbr.rel (%p415) target = $region56
        $region55: #{tpu_custom_call.1} parent=11 // pred_region
          _
        $region56: #{tpu_custom_call.1} parent=11 // pred_fallthru
          _
        // Predicated region
        $region57: #{tpu_custom_call.1} parent=11 // pred_check
          %p418 = pneg %p303
        $region58: #{tpu_custom_call.1} parent=11 // pred_check_branch
          %420 = sbr.rel (%p418) target = $region60
        $region59: #{tpu_custom_call.1} parent=11 // pred_region
          _
        $region60: #{tpu_custom_call.1} parent=11 // pred_fallthru
          _
        // Predicated region
        $region61: #{tpu_custom_call.1} parent=11 // pred_check
          %p421 = pneg %p324
        $region62: #{tpu_custom_call.1} parent=11 // pred_check_branch
          %423 = sbr.rel (%p421) target = $region64
        $region63: #{tpu_custom_call.1} parent=11 // pred_region
          _
        $region64: #{tpu_custom_call.1} parent=11 // pred_fallthru
          _
      $region12: #{tpu_custom_call.1} parent=5 // pred_fallthru
        _
      %p424 = scmp.lt.s32.totalorder %s25, 2
      // Predicated region
      $region65: #{tpu_custom_call.1} parent=5 // pred_check
        %p425 = pneg %p424
      $region66: #{tpu_custom_call.1} parent=5 // pred_check_branch
        %427 = sbr.rel (%p425) target = $region68
      $region67: #{tpu_custom_call.1} parent=5 // pred_region
        // Predicated region
        $region69: #{tpu_custom_call.1} parent=67 // pred_check
          %p428 = pneg %p45
        $region70: #{tpu_custom_call.1} parent=67 // pred_check_branch
          %430 = sbr.rel (%p428) target = $region72
        $region71: #{tpu_custom_call.1} parent=67 // pred_region
          %s431 = smul.u32 3, %s25
          %p432 = scmp.lt.s32.totalorder %s431, 5
          %s433 = scalar_select %p432, %s431, 5
          %s434 = smul.addr %s433, 8
          %s435 = scalar_lea.vmem %s0, %s434
          %s436 = smul.u32 3, %s25
        $region72: #{tpu_custom_call.1} parent=67 // pred_fallthru
          _
      $region68: #{tpu_custom_call.1} parent=5 // pred_fallthru
        _
      %p437 = scmp.le.s32.totalorder 1, %s25
      %p438 = scmp.lt.s32.totalorder %s25, 3
      %p439 = pnand %p437, %p438
      %p440 = pneg %p439
      // Predicated region
      $region73: #{tpu_custom_call.1} parent=5 // pred_check
        _
      $region74: #{tpu_custom_call.1} parent=5 // pred_check_branch
        %442 = sbr.rel (%p439) target = $region76
      $region75: #{tpu_custom_call.1} parent=5 // pred_region
        %s443 = ssub.s32 %s25, 1
        // Predicated region
        $region77: #{tpu_custom_call.1} parent=75 // pred_check
          %p444 = pneg %p135
        $region78: #{tpu_custom_call.1} parent=75 // pred_check_branch
          %446 = sbr.rel (%p444) target = $region80
        $region79: #{tpu_custom_call.1} parent=75 // pred_region
          %447 = dma.done [#allocation3], 3072
        $region80: #{tpu_custom_call.1} parent=75 // pred_fallthru
          _
        // Predicated region
        $region81: #{tpu_custom_call.1} parent=75 // pred_check
          %p448 = pneg %p198
        $region82: #{tpu_custom_call.1} parent=75 // pred_check_branch
          %450 = sbr.rel (%p448) target = $region84
        $region83: #{tpu_custom_call.1} parent=75 // pred_region
          %451 = dma.done [#allocation6], 3072
        $region84: #{tpu_custom_call.1} parent=75 // pred_fallthru
          _
        %s452 = smul.u32 3, %s30
        %p453 = scmp.lt.s32.totalorder %s452, 5
        %s454 = scalar_select %p453, %s452, 5
        %s455 = smul.addr %s454, 8
        %s456 = scalar_lea.vmem %s0, %s455
        %p457 = pneg %p51
        %p458 = pneg %p48
        %p459 = pneg %p72
        %p460 = pneg %p69
        %p461 = pneg %p93
        %p462 = pneg %p90
        %p463 = pneg %p114
        %p464 = pneg %p111
        %p465 = pneg %p135
        %p466 = pneg %p132
        %p467 = pneg %p156
        %p468 = pneg %p153
        %p469 = pneg %p177
        %p470 = pneg %p174
        %p471 = pneg %p198
        %p472 = pneg %p195
        %p473 = pneg %p219
        %p474 = pneg %p216
        %p475 = pneg %p240
        %p476 = pneg %p237
        %p477 = pneg %p261
        %p478 = pneg %p258
        %p479 = pneg %p282
        %p480 = pneg %p279
        %p481 = pneg %p303
        %p482 = pneg %p300
        %p483 = pneg %p324
        %p484 = pneg %p321
        %p485 = pneg %p350
        %p486 = pneg %p347
        %s487 = sand.u32 %s337, 1
        %s488 = scalar_lea.sflag [#allocation4], %s487
        %s489 = sand.u32 %s337, 1
        %s490 = smul.addr %s489, 24
        %s491 = scalar_lea.vmem [#allocation7], %s490
        %s492 = smul.u32 3, %s30
        %p493 = scmp.lt.s32.totalorder %s492, 5
        %s494 = scalar_select %p493, %s492, 5
        %s495 = smul.addr %s494, 8
        %s496 = scalar_lea.vmem %s0, %s495
        %s497 = smul.u32 3, %s30
        %s498 = smul.u32 3, %s30
        %v500 = vld [vmem:[%s1] sm:$0xff]
        %v501 = vld [vmem:[%s1 + $0x8] sm:$0xff]
        %v502 = vld [vmem:[%s1 + $0x10] sm:$0xff]
        %v503 = vld [vmem:[%s496] sm:$0xff]
        %v504 = vld [vmem:[%s496 + $0x8] sm:$0xff]
        %v505 = vld [vmem:[%s496 + $0x10] sm:$0xff]
        %v506 = vld [vmem:[%s2] sm:$0x1]
        %v508 = vlaneseq
        %v509 = vshrl.u32 %v508, 7
        %v510 = vsub.s32 0, %v509
        %v511 = vrot.slane %v506, %v510
        %v513 = vmul.f32 %v503, %v511
        %v514 = vmul.f32 %v504, %v511
        %v515 = vmul.f32 %v505, %v511
        %v516 = vld [vmem:[%s3] sm:$0x1]
        %v518 = vlaneseq
        %v519 = vshrl.u32 %v518, 7
        %v520 = vsub.s32 0, %v519
        %v521 = vrot.slane %v516, %v520
        %v523 = vadd.f32 %v513, %v521
        %v524 = vadd.f32 %v514, %v521
        %v525 = vadd.f32 %v515, %v521
        %v526 = vmax.f32 %v523, 0.0
        %v527 = vmax.f32 %v524, 0.0
        %v528 = vmax.f32 %v525, 0.0
        %530 = vset.pattern.permute.xlu0 0
        %531 = vperm.xlu0 %530, %v500
        %v532 = vpop.permute.xlu0 %531
        %535 = vset.pattern.permute.xlu0 0
        %536 = vperm.xlu0 %535, %v501
        %v537 = vpop.permute.xlu0 %536
        %540 = vset.pattern.permute.xlu0 0
        %541 = vperm.xlu0 %540, %v502
        %v542 = vpop.permute.xlu0 %541
        %v544 = vmul.f32 %v526, %v532
        %v545 = vmul.f32 %v527, %v537
        %v546 = vmul.f32 %v528, %v542
        %v547 = vpack.c.bf16 %v545, %v544
        %v548 = vpack.c.bf16 %v546, %v546
        %v549 = vrot.slane %v544, 7
        %v550 = vrot.slane %v545, 7
        %v551 = vrot.slane %v546, 7
        %v552 = vlaneseq
        %v553 = vshrl.u32 %v552, 7
        %vm554 = vcmp.lt.s32.totalorder %v553, 1
        %v555 = vsel %vm554, %v550, %v551
        %v556 = vsel %vm554, %v549, %v550
        %v557 = vsel %vm554, %v551, %v549
        %v558 = vpack.c.bf16 %v556, %v557
        %v559 = vpack.c.bf16 %v555, %v555
        %v560 = vrot.slane %v544, 1
        %v561 = vrot.slane %v545, 1
        %v562 = vrot.slane %v546, 1
        %vm563 = vcmp.lt.s32.totalorder %v553, 7
        %v564 = vsel %vm563, %v561, %v562
        %v565 = vsel %vm563, %v560, %v561
        %v566 = vsel %vm563, %v562, %v560
        %v567 = vpack.c.bf16 %v564, %v565
        %v568 = vpack.c.bf16 %v566, %v566
        %v569 = vld [vmem:[#allocation2] sm:$0xf]
        %v570 = vld [vmem:[#allocation2 + $0x4] sm:$0xf]
        %v571 = vld [vmem:[#allocation2 + $0x8] sm:$0xf]
        %v572 = vld [vmem:[#allocation2 + $0xc] sm:$0xf]
        %v573 = vld [vmem:[#allocation2 + $0x10] sm:$0xf]
        %v574 = vld [vmem:[#allocation2 + $0x14] sm:$0xf]
        %v575 = vld [vmem:[#allocation2 + $0x18] sm:$0xf]
        %v576 = vld [vmem:[#allocation2 + $0x1c] sm:$0xf]
        %v577 = vld [vmem:[#allocation2 + $0x20] sm:$0xf]
        %v578 = vld [vmem:[#allocation2 + $0x24] sm:$0xf]
        %v579 = vld [vmem:[#allocation2 + $0x28] sm:$0xf]
        %v580 = vld [vmem:[#allocation2 + $0x2c] sm:$0xf]
        %v581 = vld [vmem:[#allocation2 + $0x30] sm:$0xf]
        %v582 = vld [vmem:[#allocation2 + $0x34] sm:$0xf]
        %v583 = vld [vmem:[#allocation2 + $0x38] sm:$0xf]
        %v584 = vld [vmem:[#allocation2 + $0x3c] sm:$0xf]
        %v585 = vld [vmem:[#allocation2 + $0x40] sm:$0xf]
        %v586 = vld [vmem:[#allocation2 + $0x44] sm:$0xf]
        %v587 = vld [vmem:[#allocation2 + $0x48] sm:$0xf]
        %v588 = vld [vmem:[#allocation2 + $0x4c] sm:$0xf]
        %v589 = vld [vmem:[#allocation2 + $0x50] sm:$0xf]
        %v590 = vld [vmem:[#allocation2 + $0x54] sm:$0xf]
        %v591 = vld [vmem:[#allocation2 + $0x58] sm:$0xf]
        %v592 = vld [vmem:[#allocation2 + $0x5c] sm:$0xf]
        %v593 = vld [vmem:[#allocation2 + $0x60] sm:$0xf]
        %v594 = vld [vmem:[#allocation2 + $0x64] sm:$0xf]
        %v595 = vld [vmem:[#allocation2 + $0x68] sm:$0xf]
        %v596 = vld [vmem:[#allocation2 + $0x6c] sm:$0xf]
        %v597 = vld [vmem:[#allocation2 + $0x70] sm:$0xf]
        %v598 = vld [vmem:[#allocation2 + $0x74] sm:$0xf]
        %v599 = vld [vmem:[#allocation2 + $0x78] sm:$0xf]
        %v600 = vld [vmem:[#allocation2 + $0x7c] sm:$0xf]
        %v601 = vld [vmem:[#allocation2 + $0x80] sm:$0xf]
        %v602 = vld [vmem:[#allocation2 + $0x84] sm:$0xf]
        %v603 = vld [vmem:[#allocation2 + $0x88] sm:$0xf]
        %v604 = vld [vmem:[#allocation2 + $0x8c] sm:$0xf]
        %v605 = vld [vmem:[#allocation2 + $0x90] sm:$0xf]
        %v606 = vld [vmem:[#allocation2 + $0x94] sm:$0xf]
        %v607 = vld [vmem:[#allocation2 + $0x98] sm:$0xf]
        %v608 = vld [vmem:[#allocation2 + $0x9c] sm:$0xf]
        %v609 = vld [vmem:[#allocation2 + $0xa0] sm:$0xf]
        %v610 = vld [vmem:[#allocation2 + $0xa4] sm:$0xf]
        %v611 = vld [vmem:[#allocation2 + $0xa8] sm:$0xf]
        %v612 = vld [vmem:[#allocation2 + $0xac] sm:$0xf]
        %v613 = vld [vmem:[#allocation2 + $0xb0] sm:$0xf]
        %v614 = vld [vmem:[#allocation2 + $0xb4] sm:$0xf]
        %v615 = vld [vmem:[#allocation2 + $0xb8] sm:$0xf]
        %v616 = vld [vmem:[#allocation2 + $0xbc] sm:$0xf]
        %v665 = vunpack.c.l.b16 %v569
        %v666 = vunpack.c.l.b16 %v570
        %v667 = vunpack.c.l.b16 %v571
        %v668 = vunpack.c.l.b16 %v572
        %v669 = vunpack.c.l.b16 %v573
        %v670 = vunpack.c.l.b16 %v574
        %v671 = vunpack.c.l.b16 %v575
        %v672 = vunpack.c.l.b16 %v576
        %v673 = vunpack.c.l.b16 %v577
        %v674 = vunpack.c.l.b16 %v578
        %v675 = vunpack.c.l.b16 %v579
        %v676 = vunpack.c.l.b16 %v580
        %v677 = vunpack.c.l.b16 %v581
        %v678 = vunpack.c.l.b16 %v582
        %v679 = vunpack.c.l.b16 %v583
        %v680 = vunpack.c.l.b16 %v584
        %v681 = vunpack.c.l.b16 %v585
        %v682 = vunpack.c.l.b16 %v586
        %v683 = vunpack.c.l.b16 %v587
        %v684 = vunpack.c.l.b16 %v588
        %v685 = vunpack.c.l.b16 %v589
        %v686 = vunpack.c.l.b16 %v590
        %v687 = vunpack.c.l.b16 %v591
        %v688 = vunpack.c.l.b16 %v592
        %v689 = vunpack.c.l.b16 %v593
        %v690 = vunpack.c.l.b16 %v594
        %v691 = vunpack.c.l.b16 %v595
        %v692 = vunpack.c.l.b16 %v596
        %v693 = vunpack.c.l.b16 %v597
        %v694 = vunpack.c.l.b16 %v598
        %v695 = vunpack.c.l.b16 %v599
        %v696 = vunpack.c.l.b16 %v600
        %v697 = vunpack.c.l.b16 %v601
        %v698 = vunpack.c.l.b16 %v602
        %v699 = vunpack.c.l.b16 %v603
        %v700 = vunpack.c.l.b16 %v604
        %v701 = vunpack.c.l.b16 %v605
        %v702 = vunpack.c.l.b16 %v606
        %v703 = vunpack.c.l.b16 %v607
        %v704 = vunpack.c.l.b16 %v608
        %v705 = vunpack.c.l.b16 %v609
        %v706 = vunpack.c.l.b16 %v610
        %v707 = vunpack.c.l.b16 %v611
        %v708 = vunpack.c.l.b16 %v612
        %v709 = vunpack.c.l.b16 %v613
        %v710 = vunpack.c.l.b16 %v614
        %v711 = vunpack.c.l.b16 %v615
        %v712 = vunpack.c.l.b16 %v616
        %v713 = vpack.c.b16 %v666, %v665
        %v714 = vpack.c.b16 %v668, %v667
        %v715 = vpack.c.b16 %v670, %v669
        %v716 = vpack.c.b16 %v672, %v671
        %v717 = vpack.c.b16 %v674, %v673
        %v718 = vpack.c.b16 %v676, %v675
        %v719 = vpack.c.b16 %v678, %v677
        %v720 = vpack.c.b16 %v680, %v679
        %v721 = vpack.c.b16 %v682, %v681
        %v722 = vpack.c.b16 %v684, %v683
        %v723 = vpack.c.b16 %v686, %v685
        %v724 = vpack.c.b16 %v688, %v687
        %v725 = vpack.c.b16 %v690, %v689
        %v726 = vpack.c.b16 %v692, %v691
        %v727 = vpack.c.b16 %v694, %v693
        %v728 = vpack.c.b16 %v696, %v695
        %v729 = vpack.c.b16 %v698, %v697
        %v730 = vpack.c.b16 %v700, %v699
        %v731 = vpack.c.b16 %v702, %v701
        %v732 = vpack.c.b16 %v704, %v703
        %v733 = vpack.c.b16 %v706, %v705
        %v734 = vpack.c.b16 %v708, %v707
        %v735 = vpack.c.b16 %v710, %v709
        %v736 = vpack.c.b16 %v712, %v711
        %761 = vmatprep.subr.bf16.mxu0 0
        %762 = vmatpush1.bf16.msra.mxu0 %v713
        %763 = vmatprep.subr.bf16.mxu0 0
        %764 = vmatpush1.bf16.msra.mxu0 %v714
        %765 = vmatprep.subr.bf16.mxu0 0
        %766 = vmatpush1.bf16.msra.mxu0 %v715
        %767 = vmatprep.subr.bf16.mxu0 0
        %768 = vmatpush1.bf16.msra.mxu0 %v716
        %769 = vmatprep.subr.bf16.mxu0 0
        %770 = vmatpush1.bf16.msra.mxu0 %v717
        %771 = vmatprep.subr.bf16.mxu0 0
        %772 = vmatpush1.bf16.msra.mxu0 %v718
        %773 = vmatprep.subr.bf16.mxu0 0
        %774 = vmatpush1.bf16.msra.mxu0 %v719
        %775 = vmatprep.subr.bf16.mxu0 0
        %776 = vmatpush1.bf16.msra.mxu0 %v720
        %777 = vmatprep.subr.bf16.mxu0 0
        %778 = vmatpush1.bf16.msra.mxu0 %v721
        %779 = vmatprep.subr.bf16.mxu0 0
        %780 = vmatpush1.bf16.msra.mxu0 %v722
        %781 = vmatprep.subr.bf16.mxu0 0
        %782 = vmatpush1.bf16.msra.mxu0 %v723
        %783 = vmatprep.subr.bf16.mxu0 0
        %784 = vmatpush1.bf16.msra.mxu0 %v724
        %785 = vmatprep.subr.bf16.mxu0 0
        %786 = vmatpush1.bf16.msra.mxu0 %v725
        %787 = vmatprep.subr.bf16.mxu0 0
        %788 = vmatpush1.bf16.msra.mxu0 %v726
        %789 = vmatprep.subr.bf16.mxu0 0
        %790 = vmatpush1.bf16.msra.mxu0 %v727
        %791 = vmatprep.subr.bf16.mxu0 0
        %792 = vmatpush1.bf16.msra.mxu0 %v728
        %793 = vmatprep.mubr.bf16.mxu0 %v547
        %794 = vmatmul.mubr.bf16.gmra.mrb[0].mxu0 %v558
        %v795 = vpop.f32.mrb[0].mxu0
        %v796 = vadd.f32 0.0, %v795
        %v797 = vpop.f32.mrb[0].mxu0
        %v798 = vpop.f32.mrb[0].mxu0
        %v799 = vadd.f32 0.0, %v798
        %v800 = vpop.f32.mrb[0].mxu0
        %801 = vmatprep.mubr.bf16.mxu0 %v548
        %802 = vmatmul.mubr.bf16.gmra.mrb[0].mxu0 %v559
        %v803 = vpop.f32.mrb[0].mxu0
        %v804 = vadd.f32 0.0, %v803
        %v805 = vpop.f32.mrb[0].mxu0
        %v806 = vpop.f32.mrb[0].mxu0
        %v807 = vpop.f32.mrb[0].mxu0
        %808 = vdwg.mxu0
        %809 = vmatprep.subr.bf16.mxu0 0
        %810 = vmatpush1.bf16.msra.mxu0 %v729
        %811 = vmatprep.subr.bf16.mxu0 0
        %812 = vmatpush1.bf16.msra.mxu0 %v730
        %813 = vmatprep.subr.bf16.mxu0 0
        %814 = vmatpush1.bf16.msra.mxu0 %v731
        %815 = vmatprep.subr.bf16.mxu0 0
        %816 = vmatpush1.bf16.msra.mxu0 %v732
        %817 = vmatprep.subr.bf16.mxu0 0
        %818 = vmatpush1.bf16.msra.mxu0 %v733
        %819 = vmatprep.subr.bf16.mxu0 0
        %820 = vmatpush1.bf16.msra.mxu0 %v734
        %821 = vmatprep.subr.bf16.mxu0 0
        %822 = vmatpush1.bf16.msra.mxu0 %v735
        %823 = vmatprep.subr.bf16.mxu0 0
        %824 = vmatpush1.bf16.msra.mxu0 %v736
        %825 = vmatprep.subr.bf16.mxu0 0
        %826 = vmatpush1.bf16.msra.mxu0 0
        %827 = vmatprep.subr.bf16.mxu0 0
        %828 = vmatpush1.bf16.msra.mxu0 0
        %829 = vmatprep.subr.bf16.mxu0 0
        %830 = vmatpush1.bf16.msra.mxu0 0
        %831 = vmatprep.subr.bf16.mxu0 0
        %832 = vmatpush1.bf16.msra.mxu0 0
        %833 = vmatprep.subr.bf16.mxu0 0
        %834 = vmatpush1.bf16.msra.mxu0 0
        %835 = vmatprep.subr.bf16.mxu0 0
        %836 = vmatpush1.bf16.msra.mxu0 0
        %837 = vmatprep.subr.bf16.mxu0 0
        %838 = vmatpush1.bf16.msra.mxu0 0
        %839 = vmatprep.subr.bf16.mxu0 0
        %840 = vmatpush1.bf16.msra.mxu0 0
        %841 = vmatprep.mubr.bf16.mxu0 0
        %842 = vmatmul.mubr.bf16.gmra.mrb[0].mxu0 %v567
        %v843 = vpop.f32.mrb[0].mxu0
        %v844 = vadd.f32 %v796, %v843
        %v845 = vpop.f32.mrb[0].mxu0
        %v846 = vpop.f32.mrb[0].mxu0
        %v847 = vadd.f32 %v799, %v846
        %v848 = vpop.f32.mrb[0].mxu0
        %849 = vmatprep.mubr.bf16.mxu0 0
        %850 = vmatmul.mubr.bf16.gmra.mrb[0].mxu0 %v568
        %v851 = vpop.f32.mrb[0].mxu0
        %v852 = vadd.f32 %v804, %v851
        %v853 = vpop.f32.mrb[0].mxu0
        %v854 = vpop.f32.mrb[0].mxu0
        %v855 = vpop.f32.mrb[0].mxu0
        %856 = vdwg.mxu0
        %v857 = vld [vmem:[%s5] sm:$0x1]
        %v859 = vlaneseq
        %v860 = vshrl.u32 %v859, 7
        %v861 = vsub.s32 0, %v860
        %v862 = vrot.slane %v857, %v861
        %v864 = vmul.f32 %v844, %v862
        %v865 = vmul.f32 %v847, %v862
        %v866 = vmul.f32 %v852, %v862
        %v867 = vld [vmem:[%s6] sm:$0x1]
        %v869 = vlaneseq
        %v870 = vshrl.u32 %v869, 7
        %v871 = vsub.s32 0, %v870
        %v872 = vrot.slane %v867, %v871
        %v874 = vadd.f32 %v864, %v872
        %v875 = vadd.f32 %v865, %v872
        %v876 = vadd.f32 %v866, %v872
        %v877 = vmax.f32 %v874, 0.0
        %v878 = vmax.f32 %v875, 0.0
        %v879 = vmax.f32 %v876, 0.0
        %v880 = vmul.f32 %v877, %v532
        %v881 = vmul.f32 %v878, %v537
        %v882 = vmul.f32 %v879, %v542
        %v883 = vpack.c.bf16 %v881, %v880
        %v884 = vpack.c.bf16 %v882, %v882
        %v885 = vrot.slane %v880, 7
        %v886 = vrot.slane %v881, 7
        %v887 = vrot.slane %v882, 7
        %v888 = vsel %vm554, %v886, %v887
        %v889 = vsel %vm554, %v885, %v886
        %v890 = vsel %vm554, %v887, %v885
        %v891 = vpack.c.bf16 %v889, %v890
        %v892 = vpack.c.bf16 %v888, %v888
        %v893 = vrot.slane %v880, 1
        %v894 = vrot.slane %v881, 1
        %v895 = vrot.slane %v882, 1
        %v896 = vsel %vm563, %v894, %v895
        %v897 = vsel %vm563, %v893, %v894
        %v898 = vsel %vm563, %v895, %v893
        %v899 = vpack.c.bf16 %v896, %v897
        %v900 = vpack.c.bf16 %v898, %v898
        %v901 = vld [vmem:[#allocation5] sm:$0xf]
        %v902 = vld [vmem:[#allocation5 + $0x4] sm:$0xf]
        %v903 = vld [vmem:[#allocation5 + $0x8] sm:$0xf]
        %v904 = vld [vmem:[#allocation5 + $0xc] sm:$0xf]
        %v905 = vld [vmem:[#allocation5 + $0x10] sm:$0xf]
        %v906 = vld [vmem:[#allocation5 + $0x14] sm:$0xf]
        %v907 = vld [vmem:[#allocation5 + $0x18] sm:$0xf]
        %v908 = vld [vmem:[#allocation5 + $0x1c] sm:$0xf]
        %v909 = vld [vmem:[#allocation5 + $0x20] sm:$0xf]
        %v910 = vld [vmem:[#allocation5 + $0x24] sm:$0xf]
        %v911 = vld [vmem:[#allocation5 + $0x28] sm:$0xf]
        %v912 = vld [vmem:[#allocation5 + $0x2c] sm:$0xf]
        %v913 = vld [vmem:[#allocation5 + $0x30] sm:$0xf]
        %v914 = vld [vmem:[#allocation5 + $0x34] sm:$0xf]
        %v915 = vld [vmem:[#allocation5 + $0x38] sm:$0xf]
        %v916 = vld [vmem:[#allocation5 + $0x3c] sm:$0xf]
        %v917 = vld [vmem:[#allocation5 + $0x40] sm:$0xf]
        %v918 = vld [vmem:[#allocation5 + $0x44] sm:$0xf]
        %v919 = vld [vmem:[#allocation5 + $0x48] sm:$0xf]
        %v920 = vld [vmem:[#allocation5 + $0x4c] sm:$0xf]
        %v921 = vld [vmem:[#allocation5 + $0x50] sm:$0xf]
        %v922 = vld [vmem:[#allocation5 + $0x54] sm:$0xf]
        %v923 = vld [vmem:[#allocation5 + $0x58] sm:$0xf]
        %v924 = vld [vmem:[#allocation5 + $0x5c] sm:$0xf]
        %v925 = vld [vmem:[#allocation5 + $0x60] sm:$0xf]
        %v926 = vld [vmem:[#allocation5 + $0x64] sm:$0xf]
        %v927 = vld [vmem:[#allocation5 + $0x68] sm:$0xf]
        %v928 = vld [vmem:[#allocation5 + $0x6c] sm:$0xf]
        %v929 = vld [vmem:[#allocation5 + $0x70] sm:$0xf]
        %v930 = vld [vmem:[#allocation5 + $0x74] sm:$0xf]
        %v931 = vld [vmem:[#allocation5 + $0x78] sm:$0xf]
        %v932 = vld [vmem:[#allocation5 + $0x7c] sm:$0xf]
        %v933 = vld [vmem:[#allocation5 + $0x80] sm:$0xf]
        %v934 = vld [vmem:[#allocation5 + $0x84] sm:$0xf]
        %v935 = vld [vmem:[#allocation5 + $0x88] sm:$0xf]
        %v936 = vld [vmem:[#allocation5 + $0x8c] sm:$0xf]
        %v937 = vld [vmem:[#allocation5 + $0x90] sm:$0xf]
        %v938 = vld [vmem:[#allocation5 + $0x94] sm:$0xf]
        %v939 = vld [vmem:[#allocation5 + $0x98] sm:$0xf]
        %v940 = vld [vmem:[#allocation5 + $0x9c] sm:$0xf]
        %v941 = vld [vmem:[#allocation5 + $0xa0] sm:$0xf]
        %v942 = vld [vmem:[#allocation5 + $0xa4] sm:$0xf]
        %v943 = vld [vmem:[#allocation5 + $0xa8] sm:$0xf]
        %v944 = vld [vmem:[#allocation5 + $0xac] sm:$0xf]
        %v945 = vld [vmem:[#allocation5 + $0xb0] sm:$0xf]
        %v946 = vld [vmem:[#allocation5 + $0xb4] sm:$0xf]
        %v947 = vld [vmem:[#allocation5 + $0xb8] sm:$0xf]
        %v948 = vld [vmem:[#allocation5 + $0xbc] sm:$0xf]
        %v997 = vunpack.c.l.b16 %v901
        %v998 = vunpack.c.l.b16 %v902
        %v999 = vunpack.c.l.b16 %v903
        %v1000 = vunpack.c.l.b16 %v904
        %v1001 = vunpack.c.l.b16 %v905
        %v1002 = vunpack.c.l.b16 %v906
        %v1003 = vunpack.c.l.b16 %v907
        %v1004 = vunpack.c.l.b16 %v908
        %v1005 = vunpack.c.l.b16 %v909
        %v1006 = vunpack.c.l.b16 %v910
        %v1007 = vunpack.c.l.b16 %v911
        %v1008 = vunpack.c.l.b16 %v912
        %v1009 = vunpack.c.l.b16 %v913
        %v1010 = vunpack.c.l.b16 %v914
        %v1011 = vunpack.c.l.b16 %v915
        %v1012 = vunpack.c.l.b16 %v916
        %v1013 = vunpack.c.l.b16 %v917
        %v1014 = vunpack.c.l.b16 %v918
        %v1015 = vunpack.c.l.b16 %v919
        %v1016 = vunpack.c.l.b16 %v920
        %v1017 = vunpack.c.l.b16 %v921
        %v1018 = vunpack.c.l.b16 %v922
        %v1019 = vunpack.c.l.b16 %v923
        %v1020 = vunpack.c.l.b16 %v924
        %v1021 = vunpack.c.l.b16 %v925
        %v1022 = vunpack.c.l.b16 %v926
        %v1023 = vunpack.c.l.b16 %v927
        %v1024 = vunpack.c.l.b16 %v928
        %v1025 = vunpack.c.l.b16 %v929
        %v1026 = vunpack.c.l.b16 %v930
        %v1027 = vunpack.c.l.b16 %v931
        %v1028 = vunpack.c.l.b16 %v932
        %v1029 = vunpack.c.l.b16 %v933
        %v1030 = vunpack.c.l.b16 %v934
        %v1031 = vunpack.c.l.b16 %v935
        %v1032 = vunpack.c.l.b16 %v936
        %v1033 = vunpack.c.l.b16 %v937
        %v1034 = vunpack.c.l.b16 %v938
        %v1035 = vunpack.c.l.b16 %v939
        %v1036 = vunpack.c.l.b16 %v940
        %v1037 = vunpack.c.l.b16 %v941
        %v1038 = vunpack.c.l.b16 %v942
        %v1039 = vunpack.c.l.b16 %v943
        %v1040 = vunpack.c.l.b16 %v944
        %v1041 = vunpack.c.l.b16 %v945
        %v1042 = vunpack.c.l.b16 %v946
        %v1043 = vunpack.c.l.b16 %v947
        %v1044 = vunpack.c.l.b16 %v948
        %v1045 = vpack.c.b16 %v998, %v997
        %v1046 = vpack.c.b16 %v1000, %v999
        %v1047 = vpack.c.b16 %v1002, %v1001
        %v1048 = vpack.c.b16 %v1004, %v1003
        %v1049 = vpack.c.b16 %v1006, %v1005
        %v1050 = vpack.c.b16 %v1008, %v1007
        %v1051 = vpack.c.b16 %v1010, %v1009
        %v1052 = vpack.c.b16 %v1012, %v1011
        %v1053 = vpack.c.b16 %v1014, %v1013
        %v1054 = vpack.c.b16 %v1016, %v1015
        %v1055 = vpack.c.b16 %v1018, %v1017
        %v1056 = vpack.c.b16 %v1020, %v1019
        %v1057 = vpack.c.b16 %v1022, %v1021
        %v1058 = vpack.c.b16 %v1024, %v1023
        %v1059 = vpack.c.b16 %v1026, %v1025
        %v1060 = vpack.c.b16 %v1028, %v1027
        %v1061 = vpack.c.b16 %v1030, %v1029
        %v1062 = vpack.c.b16 %v1032, %v1031
        %v1063 = vpack.c.b16 %v1034, %v1033
        %v1064 = vpack.c.b16 %v1036, %v1035
        %v1065 = vpack.c.b16 %v1038, %v1037
        %v1066 = vpack.c.b16 %v1040, %v1039
        %v1067 = vpack.c.b16 %v1042, %v1041
        %v1068 = vpack.c.b16 %v1044, %v1043
        %1093 = vmatprep.subr.bf16.mxu0 0
        %1094 = vmatpush1.bf16.msra.mxu0 %v1045
        %1095 = vmatprep.subr.bf16.mxu0 0
        %1096 = vmatpush1.bf16.msra.mxu0 %v1046
        %1097 = vmatprep.subr.bf16.mxu0 0
        %1098 = vmatpush1.bf16.msra.mxu0 %v1047
        %1099 = vmatprep.subr.bf16.mxu0 0
        %1100 = vmatpush1.bf16.msra.mxu0 %v1048
        %1101 = vmatprep.subr.bf16.mxu0 0
        %1102 = vmatpush1.bf16.msra.mxu0 %v1049
        %1103 = vmatprep.subr.bf16.mxu0 0
        %1104 = vmatpush1.bf16.msra.mxu0 %v1050
        %1105 = vmatprep.subr.bf16.mxu0 0
        %1106 = vmatpush1.bf16.msra.mxu0 %v1051
        %1107 = vmatprep.subr.bf16.mxu0 0
        %1108 = vmatpush1.bf16.msra.mxu0 %v1052
        %1109 = vmatprep.subr.bf16.mxu0 0
        %1110 = vmatpush1.bf16.msra.mxu0 %v1053
        %1111 = vmatprep.subr.bf16.mxu0 0
        %1112 = vmatpush1.bf16.msra.mxu0 %v1054
        %1113 = vmatprep.subr.bf16.mxu0 0
        %1114 = vmatpush1.bf16.msra.mxu0 %v1055
        %1115 = vmatprep.subr.bf16.mxu0 0
        %1116 = vmatpush1.bf16.msra.mxu0 %v1056
        %1117 = vmatprep.subr.bf16.mxu0 0
        %1118 = vmatpush1.bf16.msra.mxu0 %v1057
        %1119 = vmatprep.subr.bf16.mxu0 0
        %1120 = vmatpush1.bf16.msra.mxu0 %v1058
        %1121 = vmatprep.subr.bf16.mxu0 0
        %1122 = vmatpush1.bf16.msra.mxu0 %v1059
        %1123 = vmatprep.subr.bf16.mxu0 0
        %1124 = vmatpush1.bf16.msra.mxu0 %v1060
        %1125 = vmatprep.mubr.bf16.mxu0 %v883
        %1126 = vmatmul.mubr.bf16.gmra.mrb[0].mxu0 %v891
        %v1127 = vpop.f32.mrb[0].mxu0
        %v1128 = vadd.f32 0.0, %v1127
        %v1129 = vpop.f32.mrb[0].mxu0
        %v1130 = vpop.f32.mrb[0].mxu0
        %v1131 = vadd.f32 0.0, %v1130
        %v1132 = vpop.f32.mrb[0].mxu0
        %1133 = vmatprep.mubr.bf16.mxu0 %v884
        %1134 = vmatmul.mubr.bf16.gmra.mrb[0].mxu0 %v892
        %v1135 = vpop.f32.mrb[0].mxu0
        %v1136 = vadd.f32 0.0, %v1135
        %v1137 = vpop.f32.mrb[0].mxu0
        %v1138 = vpop.f32.mrb[0].mxu0
        %v1139 = vpop.f32.mrb[0].mxu0
        %1140 = vdwg.mxu0
        %1141 = vmatprep.subr.bf16.mxu0 0
        %1142 = vmatpush1.bf16.msra.mxu0 %v1061
        %1143 = vmatprep.subr.bf16.mxu0 0
        %1144 = vmatpush1.bf16.msra.mxu0 %v1062
        %1145 = vmatprep.subr.bf16.mxu0 0
        %1146 = vmatpush1.bf16.msra.mxu0 %v1063
        %1147 = vmatprep.subr.bf16.mxu0 0
        %1148 = vmatpush1.bf16.msra.mxu0 %v1064
        %1149 = vmatprep.subr.bf16.mxu0 0
        %1150 = vmatpush1.bf16.msra.mxu0 %v1065
        %1151 = vmatprep.subr.bf16.mxu0 0
        %1152 = vmatpush1.bf16.msra.mxu0 %v1066
        %1153 = vmatprep.subr.bf16.mxu0 0
        %1154 = vmatpush1.bf16.msra.mxu0 %v1067
        %1155 = vmatprep.subr.bf16.mxu0 0
        %1156 = vmatpush1.bf16.msra.mxu0 %v1068
        %1157 = vmatprep.subr.bf16.mxu0 0
        %1158 = vmatpush1.bf16.msra.mxu0 0
        %1159 = vmatprep.subr.bf16.mxu0 0
        %1160 = vmatpush1.bf16.msra.mxu0 0
        %1161 = vmatprep.subr.bf16.mxu0 0
        %1162 = vmatpush1.bf16.msra.mxu0 0
        %1163 = vmatprep.subr.bf16.mxu0 0
        %1164 = vmatpush1.bf16.msra.mxu0 0
        %1165 = vmatprep.subr.bf16.mxu0 0
        %1166 = vmatpush1.bf16.msra.mxu0 0
        %1167 = vmatprep.subr.bf16.mxu0 0
        %1168 = vmatpush1.bf16.msra.mxu0 0
        %1169 = vmatprep.subr.bf16.mxu0 0
        %1170 = vmatpush1.bf16.msra.mxu0 0
        %1171 = vmatprep.subr.bf16.mxu0 0
        %1172 = vmatpush1.bf16.msra.mxu0 0
        %1173 = vmatprep.mubr.bf16.mxu0 0
        %1174 = vmatmul.mubr.bf16.gmra.mrb[0].mxu0 %v899
        %v1175 = vpop.f32.mrb[0].mxu0
        %v1176 = vadd.f32 %v1128, %v1175
        %v1177 = vpop.f32.mrb[0].mxu0
        %v1178 = vpop.f32.mrb[0].mxu0
        %v1179 = vadd.f32 %v1131, %v1178
        %v1180 = vpop.f32.mrb[0].mxu0
        %1181 = vmatprep.mubr.bf16.mxu0 0
        %1182 = vmatmul.mubr.bf16.gmra.mrb[0].mxu0 %v900
        %v1183 = vpop.f32.mrb[0].mxu0
        %v1184 = vadd.f32 %v1136, %v1183
        %v1185 = vpop.f32.mrb[0].mxu0
        %v1186 = vpop.f32.mrb[0].mxu0
        %v1187 = vpop.f32.mrb[0].mxu0
        %1188 = vdwg.mxu0
        %v1189 = vld [vmem:[%s8] sm:$0x1]
        %v1190 = vpack.c.bf16 %v1179, %v1176
        %v1191 = vpack.c.bf16 %v1184, %v1184
        %vm1192 = vcmask 195584
        %v1194 = vsel %vm1192, %v1189, 0
        %vm1196 = vcmask 1043456
        %v1198 = vsel %vm1196, %v1191, 0
        %1200 = vmatprep.subr.bf16.mxu0 0
        %1201 = vmatpush1.bf16.msra.mxu0 %v1190
        %1202 = vmatprep.subr.bf16.mxu0 0
        %1203 = vmatpush1.bf16.msra.mxu0 %v1198
        %1204 = vmatprep.subr.bf16.mxu0 0
        %1205 = vmatpush1.bf16.msra.mxu0 0
        %1206 = vmatprep.subr.bf16.mxu0 0
        %1207 = vmatpush1.bf16.msra.mxu0 0
        %1208 = vmatprep.subr.bf16.mxu0 0
        %1209 = vmatpush1.bf16.msra.mxu0 0
        %1210 = vmatprep.subr.bf16.mxu0 0
        %1211 = vmatpush1.bf16.msra.mxu0 0
        %1212 = vmatprep.subr.bf16.mxu0 0
        %1213 = vmatpush1.bf16.msra.mxu0 0
        %1214 = vmatprep.subr.bf16.mxu0 0
        %1215 = vmatpush1.bf16.msra.mxu0 0
        %1216 = vmatprep.subr.bf16.mxu0 0
        %1217 = vmatpush1.bf16.msra.mxu0 0
        %1218 = vmatprep.subr.bf16.mxu0 0
        %1219 = vmatpush1.bf16.msra.mxu0 0
        %1220 = vmatprep.subr.bf16.mxu0 0
        %1221 = vmatpush1.bf16.msra.mxu0 0
        %1222 = vmatprep.subr.bf16.mxu0 0
        %1223 = vmatpush1.bf16.msra.mxu0 0
        %1224 = vmatprep.subr.bf16.mxu0 0
        %1225 = vmatpush1.bf16.msra.mxu0 0
        %1226 = vmatprep.subr.bf16.mxu0 0
        %1227 = vmatpush1.bf16.msra.mxu0 0
        %1228 = vmatprep.subr.bf16.mxu0 0
        %1229 = vmatpush1.bf16.msra.mxu0 0
        %1230 = vmatprep.subr.bf16.mxu0 0
        %1231 = vmatpush1.bf16.msra.mxu0 0
        %1232 = vmatprep.mubr.bf16.mxu0 0
        %1233 = vmatmul.mubr.bf16.gmra.mrb[0].mxu0 %v1194
        %v1234 = vpop.f32.mrb[0].mxu0
        %v1235 = vadd.f32 0.0, %v1234
        %v1236 = vpop.f32.mrb[0].mxu0
        %v1237 = vpop.f32.mrb[0].mxu0
        %v1238 = vpop.f32.mrb[0].mxu0
        %1239 = vdwg.mxu0
        %v1240 = vpack.c.bf16 %v1235, %v1235
        %v1241 = vld [vmem:[%s10] sm:$0xf]
        %v1242 = vld [vmem:[%s10 + $0x4] sm:$0xf]
        %v1243 = vld [vmem:[%s10 + $0x8] sm:$0xf]
        %v1244 = vld [vmem:[%s10 + $0xc] sm:$0xf]
        %v1245 = vld [vmem:[%s10 + $0x10] sm:$0xf]
        %v1246 = vld [vmem:[%s10 + $0x14] sm:$0xf]
        %v1247 = vld [vmem:[%s10 + $0x18] sm:$0xf]
        %v1248 = vld [vmem:[%s10 + $0x1c] sm:$0xf]
        %v1249 = vld [vmem:[%s10 + $0x20] sm:$0xf]
        %v1250 = vld [vmem:[%s10 + $0x24] sm:$0xf]
        %v1251 = vld [vmem:[%s10 + $0x28] sm:$0xf]
        %v1252 = vld [vmem:[%s10 + $0x2c] sm:$0xf]
        %v1253 = vld [vmem:[%s10 + $0x30] sm:$0xf]
        %v1254 = vld [vmem:[%s10 + $0x34] sm:$0xf]
        %v1255 = vld [vmem:[%s10 + $0x38] sm:$0xf]
        %v1256 = vld [vmem:[%s10 + $0x3c] sm:$0xf]
        %v1257 = vld [vmem:[%s11] sm:$0x1]
        %v1274 = vunpack.c.l.b16 %v1241
        %v1275 = vunpack.c.l.b16 %v1242
        %v1276 = vunpack.c.l.b16 %v1243
        %v1277 = vunpack.c.l.b16 %v1244
        %v1278 = vunpack.c.l.b16 %v1245
        %v1279 = vunpack.c.l.b16 %v1246
        %v1280 = vunpack.c.l.b16 %v1247
        %v1281 = vunpack.c.l.b16 %v1248
        %v1282 = vunpack.c.l.b16 %v1249
        %v1283 = vunpack.c.l.b16 %v1250
        %v1284 = vunpack.c.l.b16 %v1251
        %v1285 = vunpack.c.l.b16 %v1252
        %v1286 = vunpack.c.l.b16 %v1253
        %v1287 = vunpack.c.l.b16 %v1254
        %v1288 = vunpack.c.l.b16 %v1255
        %v1289 = vunpack.c.l.b16 %v1256
        %v1290 = vpack.c.b16 %v1275, %v1274
        %v1291 = vpack.c.b16 %v1277, %v1276
        %v1292 = vpack.c.b16 %v1279, %v1278
        %v1293 = vpack.c.b16 %v1281, %v1280
        %v1294 = vpack.c.b16 %v1283, %v1282
        %v1295 = vpack.c.b16 %v1285, %v1284
        %v1296 = vpack.c.b16 %v1287, %v1286
        %v1297 = vpack.c.b16 %v1289, %v1288
        %1306 = vmatprep.subr.bf16.mxu0 0
        %1307 = vmatpush1.bf16.msra.mxu0 %v1290
        %1308 = vmatprep.subr.bf16.mxu0 0
        %1309 = vmatpush1.bf16.msra.mxu0 %v1291
        %1310 = vmatprep.subr.bf16.mxu0 0
        %1311 = vmatpush1.bf16.msra.mxu0 %v1292
        %1312 = vmatprep.subr.bf16.mxu0 0
        %1313 = vmatpush1.bf16.msra.mxu0 %v1293
        %1314 = vmatprep.subr.bf16.mxu0 0
        %1315 = vmatpush1.bf16.msra.mxu0 %v1294
        %1316 = vmatprep.subr.bf16.mxu0 0
        %1317 = vmatpush1.bf16.msra.mxu0 %v1295
        %1318 = vmatprep.subr.bf16.mxu0 0
        %1319 = vmatpush1.bf16.msra.mxu0 %v1296
        %1320 = vmatprep.subr.bf16.mxu0 0
        %1321 = vmatpush1.bf16.msra.mxu0 %v1297
        %1322 = vmatprep.subr.bf16.mxu0 0
        %1323 = vmatpush1.bf16.msra.mxu0 0
        %1324 = vmatprep.subr.bf16.mxu0 0
        %1325 = vmatpush1.bf16.msra.mxu0 0
        %1326 = vmatprep.subr.bf16.mxu0 0
        %1327 = vmatpush1.bf16.msra.mxu0 0
        %1328 = vmatprep.subr.bf16.mxu0 0
        %1329 = vmatpush1.bf16.msra.mxu0 0
        %1330 = vmatprep.subr.bf16.mxu0 0
        %1331 = vmatpush1.bf16.msra.mxu0 0
        %1332 = vmatprep.subr.bf16.mxu0 0
        %1333 = vmatpush1.bf16.msra.mxu0 0
        %1334 = vmatprep.subr.bf16.mxu0 0
        %1335 = vmatpush1.bf16.msra.mxu0 0
        %1336 = vmatprep.subr.bf16.mxu0 0
        %1337 = vmatpush1.bf16.msra.mxu0 0
        %1338 = vmatprep.mubr.bf16.mxu0 0
        %1339 = vmatmul.mubr.bf16.gmra.mrb[0].mxu0 %v1240
        %v1340 = vpop.f32.mrb[0].mxu0
        %v1341 = vadd.f32 %v1257, %v1340
        %v1342 = vpop.f32.mrb[0].mxu0
        %v1343 = vpop.f32.mrb[0].mxu0
        %v1344 = vpop.f32.mrb[0].mxu0
        %1345 = vdwg.mxu0
        %v1346 = vmax.f32 %v1341, 0.0
        %v1347 = vpack.c.bf16 %v1346, %v1346
        %v1348 = vld [vmem:[%s12] sm:$0x1]
        %v1349 = vld [vmem:[%s13] sm:$0x1]
        %vm1350 = vcmask 15360
        %v1352 = vsel %vm1350, %v1347, 0
        %vm1354 = vcmask 1040384
        %v1356 = vsel %vm1354, %v1348, 0
        %1358 = vmatprep.subr.bf16.mxu0 0
        %1359 = vmatpush1.bf16.msra.mxu0 %v1356
        %1360 = vmatprep.subr.bf16.mxu0 0
        %1361 = vmatpush1.bf16.msra.mxu0 0
        %1362 = vmatprep.subr.bf16.mxu0 0
        %1363 = vmatpush1.bf16.msra.mxu0 0
        %1364 = vmatprep.subr.bf16.mxu0 0
        %1365 = vmatpush1.bf16.msra.mxu0 0
        %1366 = vmatprep.subr.bf16.mxu0 0
        %1367 = vmatpush1.bf16.msra.mxu0 0
        %1368 = vmatprep.subr.bf16.mxu0 0
        %1369 = vmatpush1.bf16.msra.mxu0 0
        %1370 = vmatprep.subr.bf16.mxu0 0
        %1371 = vmatpush1.bf16.msra.mxu0 0
        %1372 = vmatprep.subr.bf16.mxu0 0
        %1373 = vmatpush1.bf16.msra.mxu0 0
        %1374 = vmatprep.subr.bf16.mxu0 0
        %1375 = vmatpush1.bf16.msra.mxu0 0
        %1376 = vmatprep.subr.bf16.mxu0 0
        %1377 = vmatpush1.bf16.msra.mxu0 0
        %1378 = vmatprep.subr.bf16.mxu0 0
        %1379 = vmatpush1.bf16.msra.mxu0 0
        %1380 = vmatprep.subr.bf16.mxu0 0
        %1381 = vmatpush1.bf16.msra.mxu0 0
        %1382 = vmatprep.subr.bf16.mxu0 0
        %1383 = vmatpush1.bf16.msra.mxu0 0
        %1384 = vmatprep.subr.bf16.mxu0 0
        %1385 = vmatpush1.bf16.msra.mxu0 0
        %1386 = vmatprep.subr.bf16.mxu0 0
        %1387 = vmatpush1.bf16.msra.mxu0 0
        %1388 = vmatprep.subr.bf16.mxu0 0
        %1389 = vmatpush1.bf16.msra.mxu0 0
        %1390 = vmatprep.mubr.bf16.mxu0 0
        %1391 = vmatmul.mubr.bf16.gmra.mrb[0].mxu0 %v1352
        %v1392 = vpop.f32.mrb[0].mxu0
        %v1393 = vadd.f32 %v1349, %v1392
        %v1394 = vpop.f32.mrb[0].mxu0
        %v1395 = vpop.f32.mrb[0].mxu0
        %v1396 = vpop.f32.mrb[0].mxu0
        %1397 = vdwg.mxu0
        %v1398 = vxor.u32 %v1393, 2147483648
        %v1399 = vmul.f32 %v1398, 1.442695
        %v1400 = vpow.pop %v1399
        %v1401 = vadd.f32 %v1400, 1.0
        %v1402 = vrcp.pop %v1401
        %v1403 = vmul.f32 1.0, %v1402
        %v1404 = vlaneseq
        %v1405 = vshrl.u32 %v1404, 7
        %v1406 = vsub.s32 0, %v1405
        %v1407 = vrot.slane %v1403, %v1406
        %v1408 = vmul.f32 %v1176, %v1407
        %v1409 = vmul.f32 %v1179, %v1407
        %v1410 = vmul.f32 %v1184, %v1407
        %1411 = vst [vmem:[%s491] sm:$0xff] %v1408
        %1412 = vst [vmem:[%s491 + $0x8] sm:$0xff] %v1409
        %1413 = vst [vmem:[%s491 + $0x10] sm:$0xff] %v1410
        %s1414 = sand.u32 %s337, 1
        %s1415 = scalar_lea.sflag [#allocation4], %s1414
        %s1416 = sand.u32 %s337, 1
        %s1417 = smul.addr %s1416, 24
        %s1418 = scalar_lea.vmem [#allocation7], %s1417
        // Predicated region
        $region85: #{tpu_custom_call.1} parent=75 // pred_check
          %p1419 = pneg %p347
        $region86: #{tpu_custom_call.1} parent=75 // pred_check_branch
          %1421 = sbr.rel (%p1419) target = $region88
        $region87: #{tpu_custom_call.1} parent=75 // pred_region
          %s1422 = smul.u32 3, %s30
          %s1424 = ssub.s32 384, 384
          %1425 = vsyncadd %s1415, %s1424
          %s1426 = smul.addr %s1422, 128
          %s1427 = scalar_lea.hbm %s14, %s1426
          %s1428 = sshll.u32 %s1418, 4
          %s1429 = int_to_ptr.vmem [resolvable:$true] %s1428
          %1434 = dma.vmem_to_hbm [thread:$0]  %s1429, 384, %s1427, %s1415, 128, 128, 8
        $region88: #{tpu_custom_call.1} parent=75 // pred_fallthru
          _
      $region76: #{tpu_custom_call.1} parent=5 // pred_fallthru
        _
      %p1435 = scmp.le.s32.totalorder 2, %s25
      // Predicated region
      $region89: #{tpu_custom_call.1} parent=5 // pred_check
        %p1436 = pneg %p1435
      $region90: #{tpu_custom_call.1} parent=5 // pred_check_branch
        %1438 = sbr.rel (%p1436) target = $region92
      $region91: #{tpu_custom_call.1} parent=5 // pred_region
        %s1439 = ssub.s32 %s25, 2
        // Predicated region
        $region93: #{tpu_custom_call.1} parent=91 // pred_check
          %p1440 = pneg %p353
        $region94: #{tpu_custom_call.1} parent=91 // pred_check_branch
          %1442 = sbr.rel (%p1440) target = $region96
        $region95: #{tpu_custom_call.1} parent=91 // pred_region
          %s1443 = sand.u32 %s338, 1
          %s1444 = scalar_lea.sflag [#allocation4], %s1443
          %s1445 = sand.u32 %s338, 1
          %s1446 = smul.addr %s1445, 24
          %s1447 = scalar_lea.vmem [#allocation7], %s1446
          %1448 = dma.done %s1444, 384
        $region96: #{tpu_custom_call.1} parent=91 // pred_fallthru
          _
      $region92: #{tpu_custom_call.1} parent=5 // pred_fallthru
        _
    $region6: #{tpu_custom_call.1} parent=1 // loop_footer
      %s29 = sadd.s32 1, %s25
    $region7: #{tpu_custom_call.1} parent=1 // loop_footer_branch
      %24 = sbr.rel target = $region3
    $region8: #{tpu_custom_call.1} parent=1 // loop_exit
      _
    %1449 = vsyncpa [#allocation3], 1
    %s1450 = scalar_lea.sflag [#allocation3], 1
    %1451 = vsyncpa %s1450, 1
    %1452 = vsyncpa [#allocation6], 1
    %1453 = vsyncpa [#allocation4], 1
    %s1454 = scalar_lea.sflag [#allocation4], 1
    %1455 = vsyncpa %s1454, 1

</llo_original>
